<compile_context>
chip_gen: v7x
topology: tpu7x:2x2x1
jax: 0.10.0
libtpu: 0.0.40
codegen_flags: <defaults>
</compile_context>

<pallas_src>
import functools

import jax
import jax.numpy as jnp
from jax.experimental import pallas as pl
from jax.experimental.pallas import tpu as pltpu


# ----------------------------------------------------------------------------
# small compatibility helpers
# ----------------------------------------------------------------------------

def _recip(x):
    if hasattr(pl, "reciprocal"):
        return pl.reciprocal(x, approx=True)
    return 1.0 / x


def _compiler_params(n_grid_axes):
    sem = ("parallel",) * n_grid_axes
    if hasattr(pltpu, "CompilerParams"):
        return pltpu.CompilerParams(dimension_semantics=sem)
    if hasattr(pltpu, "TPUCompilerParams"):
        return pltpu.TPUCompilerParams(dimension_semantics=sem)
    return None


# ----------------------------------------------------------------------------
# fused forward kernel: one program = one batch element
# ----------------------------------------------------------------------------

def _nap_fused_kernel(
    x_ref, y_ref, mask_ref,
    xw_ref, xb_ref, yw_ref, yb_ref,
    wqkv_ref, bqkv_ref, wo_ref, bo_ref,
    ln1g_ref, ln1b_ref, w1_ref, b1_ref, w2_ref, b2_ref,
    ln2g_ref, ln2b_ref,
    wdec_ref, bdec_ref,
    out_ref,
    *, nhead, nlayers, max_n_train):
    f32 = jnp.float32
    bf16 = jnp.bfloat16

    x = x_ref[0]                      # (T, d_x) f32
    y = y_ref[0]                      # (T, 1)   f32
    T = x.shape[0]
    E = xw_ref.shape[1]
    dh = E // nhead
    scale = 1.0 / float(dh) ** 0.5

    # --- encoders (PFN-style: only train/context rows carry their y embedding)
    x_emb = jnp.dot(x.astype(bf16), xw_ref[...],
                    preferred_element_type=f32) + xb_ref[...]
    y_emb = y * yw_ref[...] + yb_ref[...]          # K=1 matmul done on the VPU
    is_train = jax.lax.broadcasted_iota(jnp.int32, (T, 1), 0) < max_n_train
    h = x_emb + jnp.where(is_train, y_emb, 0.0)    # (T, E) f32

    mask = mask_ref[...]                           # hoisted: used every layer

    def layer_norm(v, g, b):                       # f32 math, eps = 1e-5
        mu = jnp.mean(v, axis=-1, keepdims=True)
        var = jnp.mean((v - mu) ** 2, axis=-1, keepdims=True)
        return (v - mu) * jax.lax.rsqrt(var + 1e-5) * g + b

    # --- transformer encoder layers (post-norm, relu FFN), statically unrolled
    for l in range(nlayers):
        wqkv = wqkv_ref[l]                         # (E, 3E) bf16
        wo = wo_ref[l]                             # (E, E)  bf16

        qkv = jnp.dot(h.astype(bf16), wqkv,
                      preferred_element_type=f32) + bqkv_ref[l]   # (T, 3E)

        heads = []
        for hd in range(nhead):                    # heads sliced in-register
            q = qkv[:, hd * dh:(hd + 1) * dh]
            k = qkv[:, E + hd * dh:E + (hd + 1) * dh]
            v = qkv[:, 2 * E + hd * dh:2 * E + (hd + 1) * dh]
            s = jnp.dot(q.astype(bf16), k.astype(bf16).T,
                        preferred_element_type=f32) * scale + mask
            s = s - jnp.max(s, axis=-1, keepdims=True)
            p = jnp.exp(s)
            p = p * _recip(jnp.sum(p, axis=-1, keepdims=True))
            heads.append(jnp.dot(p.astype(bf16), v.astype(bf16),
                                 preferred_element_type=f32))     # (T, dh)
        attn = jnp.concatenate(heads, axis=1)                     # (T, E)
        attn = jnp.dot(attn.astype(bf16), wo,
                       preferred_element_type=f32) + bo_ref[l]

        h1 = layer_norm(h + attn, ln1g_ref[l], ln1b_ref[l])
        ff = jnp.dot(h1.astype(bf16), w1_ref[l],
                     preferred_element_type=f32) + b1_ref[l]
        ff = jnp.maximum(ff, 0.0)
        ff = jnp.dot(ff.astype(bf16), w2_ref[l],
                     preferred_element_type=f32) + b2_ref[l]
        h = layer_norm(h1 + ff, ln2g_ref[l], ln2b_ref[l])

    # --- fused bucket_decoder (logits) + f-prediction heads on the test rows
    h_test = h[max_n_train:, :]                                   # (n_test, E)
    dec = jnp.dot(h_test.astype(bf16), wdec_ref[...],
                  preferred_element_type=f32) + bdec_ref[...]     # (n_test, 2)
    out_ref[0] = dec


# ----------------------------------------------------------------------------
# wrapper (mirrors NAP.forward: returns logits (B, T - max_n_train), fpred, values)
# ----------------------------------------------------------------------------

def nap_forward(params, states, y_train, masks, state_ix, *, nhead, max_n_train):
    # TODO(synk): state_ix is accepted by the reference TransformerModel but is
    # not used by the plain PFN forward path modeled here.
    del state_ix
    B, T, d_x = states.shape
    E = params["x_enc_w"].shape[1]
    nlayers = params["wqkv"].shape[0]
    n_test = T - max_n_train

    y3 = y_train.reshape(B, T, 1).astype(jnp.float32)

    def resident(a):            # whole array in VMEM, same block every step
        nd = a.ndim
        return pl.BlockSpec(a.shape, lambda b, nd=nd: (0,) * nd)

    kernel = functools.partial(_nap_fused_kernel, nhead=nhead,
                               nlayers=int(nlayers), max_n_train=max_n_train)

    in_specs = [
        pl.BlockSpec((1, T, d_x), lambda b: (b, 0, 0)),     # states
        pl.BlockSpec((1, T, 1), lambda b: (b, 0, 0)),       # y
        resident(masks),
        resident(params["x_enc_w"]), resident(params["x_enc_b"]),
        resident(params["y_enc_w"]), resident(params["y_enc_b"]),
        resident(params["wqkv"]), resident(params["bqkv"]),
        resident(params["wo"]), resident(params["bo"]),
        resident(params["ln1_g"]), resident(params["ln1_b"]),
        resident(params["w1"]), resident(params["b1"]),
        resident(params["w2"]), resident(params["b2"]),
        resident(params["ln2_g"]), resident(params["ln2_b"]),
        resident(params["dec_w"]), resident(params["dec_b"]),
    ]

    out = pl.pallas_call(
        kernel,
        out_shape=jax.ShapeDtypeStruct((B, n_test, 2), jnp.float32),
        grid=(B,),
        in_specs=in_specs,
        out_specs=pl.BlockSpec((1, n_test, 2), lambda b: (b, 0, 0)),
        compiler_params=_compiler_params(1),
    )(states, y3, masks,
      params["x_enc_w"], params["x_enc_b"], params["y_enc_w"], params["y_enc_b"],
      params["wqkv"], params["bqkv"], params["wo"], params["bo"],
      params["ln1_g"], params["ln1_b"], params["w1"], params["b1"],
      params["w2"], params["b2"], params["ln2_g"], params["ln2_b"],
      params["dec_w"], params["dec_b"])

    logits = out[:, :, 0]                    # logits.squeeze_(2)
    fpred = out[:, :, 1:2]
    values = jnp.zeros((B,), jnp.float32)    # use_value_network = False
    return logits, fpred, values


# ----------------------------------------------------------------------------
# deterministic parameter construction (NAP.init_weights: W ~ N(0, 0.01), b = 0)
# matmul weights stored in bf16 (MXU inputs); biases / LN params in f32.
# ----------------------------------------------------------------------------

def make_params(key, d_x, emsize, nhead, nhid, nlayers):
    ks = iter(jax.random.split(key, 8 + 6 * nlayers))

    def lin(k, fi, fo, dtype=jnp.bfloat16):
        return (0.01 * jax.random.normal(k, (fi, fo), jnp.float32)).astype(dtype)

    z = lambda *s: jnp.zeros(s, jnp.float32)
    o = lambda *s: jnp.ones(s, jnp.float32)

    wqkv, wo, w1, w2 = [], [], [], []
    for _ in range(nlayers):
        wq = lin(next(ks), emsize, emsize)
        wk = lin(next(ks), emsize, emsize)
        wv = lin(next(ks), emsize, emsize)
        wqkv.append(jnp.concatenate([wq, wk, wv], axis=1))     # fused (E, 3E)
        wo.append(lin(next(ks), emsize, emsize))
        w1.append(lin(next(ks), emsize, nhid))
        w2.append(lin(next(ks), nhid, emsize))

    params = {
        "x_enc_w": lin(next(ks), d_x, emsize), "x_enc_b": z(1, emsize),
        "y_enc_w": lin(next(ks), 1, emsize, jnp.float32), "y_enc_b": z(1, emsize),
        "wqkv": jnp.stack(wqkv), "bqkv": z(nlayers, 1, 3 * emsize),
        "wo": jnp.stack(wo), "bo": z(nlayers, 1, emsize),
        "ln1_g": o(nlayers, 1, emsize), "ln1_b": z(nlayers, 1, emsize),
        "w1": jnp.stack(w1), "b1": z(nlayers, 1, nhid),
        "w2": jnp.stack(w2), "b2": z(nlayers, 1, emsize),
        "ln2_g": o(nlayers, 1, emsize), "ln2_b": z(nlayers, 1, emsize),
        # fused bucket_decoder (logits) | f head: (E, 2)
        "dec_w": jnp.concatenate([lin(next(ks), emsize, 1),
                                  lin(next(ks), emsize, 1)], axis=1),
        "dec_b": z(1, 2),
    }
    return params


def make_pfn_mask(T, max_n_train):
    """Additive mask: everyone attends to the train/context block; test points
    additionally attend to themselves (standard PFN/NAP attention pattern)."""
    col = jnp.arange(T)[None, :]
    row = jnp.arange(T)[:, None]
    allowed = (col < max_n_train) | (col == row)
    return jnp.where(allowed, 0.0, -1e9).astype(jnp.float32)


# ----------------------------------------------------------------------------
if __name__ == "__main__":
    # NAP sizes: N_features = 6  =>  states last dim = N_features - 2 = 4
    B, T, d_x = 2, 8, 4
    max_n_train = 4
    emsize, nhead, nhid, nlayers = 32, 2, 64, 2

    root = jax.random.PRNGKey(0)
    k_param, k_x, k_y, k_ix = jax.random.split(root, 4)

    params = make_params(k_param, d_x, emsize, nhead, nhid, nlayers)

    states = jax.random.normal(k_x, (B, T, d_x), jnp.float32)
    y_train = jax.random.normal(k_y, (B, T), jnp.float32)
    state_ix = jax.random.normal(k_ix, (B, 1), jnp.float32)
    masks = make_pfn_mask(T, max_n_train)

    fwd = jax.jit(functools.partial(nap_forward, nhead=nhead,
                                    max_n_train=max_n_train))
    logits, fpred, values = fwd(params, states, y_train, masks, state_ix)
    jax.block_until_ready((logits, fpred, values))

    assert logits.shape == (B, T - max_n_train)
    assert fpred.shape == (B, T - max_n_train, 1)
    assert values.shape == (B,)
    assert bool(jnp.all(jnp.isfinite(logits)))
    assert bool(jnp.all(jnp.isfinite(fpred)))
    print("KERNEL_OK")
</pallas_src>

<mosaic_0001>
module attributes {stable_mosaic.version = 11 : i64} {
  func.func @_nap_fused_kernel(%arg0: i32, %arg1: memref<1x8x4xf32, #tpu.memory_space<vmem>>, %arg2: memref<1x8x1xf32, #tpu.memory_space<vmem>>, %arg3: memref<8x8xf32, #tpu.memory_space<vmem>>, %arg4: memref<4x32xbf16, #tpu.memory_space<vmem>>, %arg5: memref<1x32xf32, #tpu.memory_space<vmem>>, %arg6: memref<1x32xf32, #tpu.memory_space<vmem>>, %arg7: memref<1x32xf32, #tpu.memory_space<vmem>>, %arg8: memref<2x32x96xbf16, #tpu.memory_space<vmem>>, %arg9: memref<2x1x96xf32, #tpu.memory_space<vmem>>, %arg10: memref<2x32x32xbf16, #tpu.memory_space<vmem>>, %arg11: memref<2x1x32xf32, #tpu.memory_space<vmem>>, %arg12: memref<2x1x32xf32, #tpu.memory_space<vmem>>, %arg13: memref<2x1x32xf32, #tpu.memory_space<vmem>>, %arg14: memref<2x32x64xbf16, #tpu.memory_space<vmem>>, %arg15: memref<2x1x64xf32, #tpu.memory_space<vmem>>, %arg16: memref<2x64x32xbf16, #tpu.memory_space<vmem>>, %arg17: memref<2x1x32xf32, #tpu.memory_space<vmem>>, %arg18: memref<2x1x32xf32, #tpu.memory_space<vmem>>, %arg19: memref<2x1x32xf32, #tpu.memory_space<vmem>>, %arg20: memref<32x2xbf16, #tpu.memory_space<vmem>>, %arg21: memref<1x2xf32, #tpu.memory_space<vmem>>, %arg22: memref<1x4x2xf32, #tpu.memory_space<vmem>>) attributes {dimension_semantics = [#tpu.dimension_semantics<parallel>], iteration_bounds = array<i64: 2>, scalar_prefetch = 0 : i64, scratch_operands = 0 : i64, tpu.core_type = #tpu.core_type<tc>, window_params = [{transform_indices = @transform_0, window_bounds = array<i64: 1, 8, 4>}, {transform_indices = @transform_1, window_bounds = array<i64: 1, 8, 1>}, {pipeline_mode = #tpu.pipeline_mode<synchronous>, transform_indices = @transform_2, window_bounds = array<i64: 8, 8>}, {pipeline_mode = #tpu.pipeline_mode<synchronous>, transform_indices = @transform_3, window_bounds = array<i64: 4, 32>}, {pipeline_mode = #tpu.pipeline_mode<synchronous>, transform_indices = @transform_4, window_bounds = array<i64: 1, 32>}, {pipeline_mode = #tpu.pipeline_mode<synchronous>, transform_indices = @transform_5, window_bounds = array<i64: 1, 32>}, {pipeline_mode = #tpu.pipeline_mode<synchronous>, transform_indices = @transform_6, window_bounds = array<i64: 1, 32>}, {pipeline_mode = #tpu.pipeline_mode<synchronous>, transform_indices = @transform_7, window_bounds = array<i64: 2, 32, 96>}, {pipeline_mode = #tpu.pipeline_mode<synchronous>, transform_indices = @transform_8, window_bounds = array<i64: 2, 1, 96>}, {pipeline_mode = #tpu.pipeline_mode<synchronous>, transform_indices = @transform_9, window_bounds = array<i64: 2, 32, 32>}, {pipeline_mode = #tpu.pipeline_mode<synchronous>, transform_indices = @transform_10, window_bounds = array<i64: 2, 1, 32>}, {pipeline_mode = #tpu.pipeline_mode<synchronous>, transform_indices = @transform_11, window_bounds = array<i64: 2, 1, 32>}, {pipeline_mode = #tpu.pipeline_mode<synchronous>, transform_indices = @transform_12, window_bounds = array<i64: 2, 1, 32>}, {pipeline_mode = #tpu.pipeline_mode<synchronous>, transform_indices = @transform_13, window_bounds = array<i64: 2, 32, 64>}, {pipeline_mode = #tpu.pipeline_mode<synchronous>, transform_indices = @transform_14, window_bounds = array<i64: 2, 1, 64>}, {pipeline_mode = #tpu.pipeline_mode<synchronous>, transform_indices = @transform_15, window_bounds = array<i64: 2, 64, 32>}, {pipeline_mode = #tpu.pipeline_mode<synchronous>, transform_indices = @transform_16, window_bounds = array<i64: 2, 1, 32>}, {pipeline_mode = #tpu.pipeline_mode<synchronous>, transform_indices = @transform_17, window_bounds = array<i64: 2, 1, 32>}, {pipeline_mode = #tpu.pipeline_mode<synchronous>, transform_indices = @transform_18, window_bounds = array<i64: 2, 1, 32>}, {pipeline_mode = #tpu.pipeline_mode<synchronous>, transform_indices = @transform_19, window_bounds = array<i64: 32, 2>}, {pipeline_mode = #tpu.pipeline_mode<synchronous>, transform_indices = @transform_20, window_bounds = array<i64: 1, 2>}, {transform_indices = @transform_21, window_bounds = array<i64: 1, 4, 2>}]} {
    %c0 = arith.constant 0 : index
    %c0_0 = arith.constant 0 : index
    %c0_1 = arith.constant 0 : index
    %0 = vector.load %arg1[%c0, %c0_0, %c0_1] : memref<1x8x4xf32, #tpu.memory_space<vmem>>, vector<1x8x4xf32>
    %1 = vector.shape_cast %0 : vector<1x8x4xf32> to vector<8x4xf32>
    %c0_2 = arith.constant 0 : index
    %c0_3 = arith.constant 0 : index
    %c0_4 = arith.constant 0 : index
    %2 = vector.load %arg2[%c0_2, %c0_3, %c0_4] : memref<1x8x1xf32, #tpu.memory_space<vmem>>, vector<1x8x1xf32>
    %3 = vector.shape_cast %2 : vector<1x8x1xf32> to vector<8x1xf32>
    %4 = arith.truncf %1 : vector<8x4xf32> to vector<8x4xbf16>
    %c0_5 = arith.constant 0 : index
    %c0_6 = arith.constant 0 : index
    %5 = vector.load %arg4[%c0_5, %c0_6] : memref<4x32xbf16, #tpu.memory_space<vmem>>, vector<4x32xbf16>
    %cst = arith.constant dense<0.000000e+00> : vector<8x32xf32>
    %6 = tpu.matmul %4, %5, %cst {dimension_numbers = #tpu.dot_dimension_numbers<[1], [0], [0], [1], [0, 0, 1, 1], [], []>} : vector<8x4xbf16>, vector<4x32xbf16>, vector<8x32xf32> -> vector<8x32xf32>
    %c0_7 = arith.constant 0 : index
    %c0_8 = arith.constant 0 : index
    %7 = vector.load %arg5[%c0_7, %c0_8] : memref<1x32xf32, #tpu.memory_space<vmem>>, vector<1x32xf32>
    %8 = vector.broadcast %7 : vector<1x32xf32> to vector<8x32xf32>
    %9 = arith.addf %6, %8 : vector<8x32xf32>
    %c0_9 = arith.constant 0 : index
    %c0_10 = arith.constant 0 : index
    %10 = vector.load %arg6[%c0_9, %c0_10] : memref<1x32xf32, #tpu.memory_space<vmem>>, vector<1x32xf32>
    %11 = vector.broadcast %3 : vector<8x1xf32> to vector<8x32xf32>
    %12 = vector.broadcast %10 : vector<1x32xf32> to vector<8x32xf32>
    %13 = arith.mulf %11, %12 : vector<8x32xf32>
    %c0_11 = arith.constant 0 : index
    %c0_12 = arith.constant 0 : index
    %14 = vector.load %arg7[%c0_11, %c0_12] : memref<1x32xf32, #tpu.memory_space<vmem>>, vector<1x32xf32>
    %15 = vector.broadcast %14 : vector<1x32xf32> to vector<8x32xf32>
    %16 = arith.addf %13, %15 : vector<8x32xf32>
    %17 = tpu.iota {dimensions = array<i32: 0>} : vector<8x1xi32>
    %c4_i32 = arith.constant 4 : i32
    %18 = vector.broadcast %c4_i32 : i32 to vector<8x1xi32>
    %19 = arith.cmpi slt, %17, %18 : vector<8x1xi32>
    %cst_13 = arith.constant 0.000000e+00 : f32
    %20 = vector.shape_cast %19 : vector<8x1xi1> to vector<8x1xi1>
    %21 = vector.broadcast %20 : vector<8x1xi1> to vector<8x32xi1>
    %22 = vector.broadcast %cst_13 : f32 to vector<8x32xf32>
    %23 = arith.select %21, %16, %22 : vector<8x32xi1>, vector<8x32xf32>
    %24 = arith.addf %9, %23 : vector<8x32xf32>
    %c0_14 = arith.constant 0 : index
    %c0_15 = arith.constant 0 : index
    %25 = vector.load %arg3[%c0_14, %c0_15] : memref<8x8xf32, #tpu.memory_space<vmem>>, vector<8x8xf32>
    %c0_16 = arith.constant 0 : index
    %c0_17 = arith.constant 0 : index
    %c0_18 = arith.constant 0 : index
    %26 = vector.load %arg8[%c0_16, %c0_17, %c0_18] : memref<2x32x96xbf16, #tpu.memory_space<vmem>>, vector<1x32x96xbf16>
    %27 = vector.shape_cast %26 : vector<1x32x96xbf16> to vector<32x96xbf16>
    %c0_19 = arith.constant 0 : index
    %c0_20 = arith.constant 0 : index
    %c0_21 = arith.constant 0 : index
    %28 = vector.load %arg10[%c0_19, %c0_20, %c0_21] : memref<2x32x32xbf16, #tpu.memory_space<vmem>>, vector<1x32x32xbf16>
    %29 = vector.shape_cast %28 : vector<1x32x32xbf16> to vector<32x32xbf16>
    %30 = arith.truncf %24 : vector<8x32xf32> to vector<8x32xbf16>
    %cst_22 = arith.constant dense<0.000000e+00> : vector<8x96xf32>
    %31 = tpu.matmul %30, %27, %cst_22 {dimension_numbers = #tpu.dot_dimension_numbers<[1], [0], [0], [1], [0, 0, 1, 1], [], []>} : vector<8x32xbf16>, vector<32x96xbf16>, vector<8x96xf32> -> vector<8x96xf32>
    %c0_23 = arith.constant 0 : index
    %c0_24 = arith.constant 0 : index
    %c0_25 = arith.constant 0 : index
    %32 = vector.load %arg9[%c0_23, %c0_24, %c0_25] : memref<2x1x96xf32, #tpu.memory_space<vmem>>, vector<1x1x96xf32>
    %33 = vector.shape_cast %32 : vector<1x1x96xf32> to vector<1x96xf32>
    %34 = vector.broadcast %33 : vector<1x96xf32> to vector<8x96xf32>
    %35 = arith.addf %31, %34 : vector<8x96xf32>
    %36 = vector.extract_strided_slice %35 {offsets = [0, 0], sizes = [8, 16], strides = [1, 1]} : vector<8x96xf32> to vector<8x16xf32>
    %37 = vector.extract_strided_slice %35 {offsets = [0, 32], sizes = [8, 16], strides = [1, 1]} : vector<8x96xf32> to vector<8x16xf32>
    %38 = vector.extract_strided_slice %35 {offsets = [0, 64], sizes = [8, 16], strides = [1, 1]} : vector<8x96xf32> to vector<8x16xf32>
    %39 = arith.truncf %36 : vector<8x16xf32> to vector<8x16xbf16>
    %40 = arith.truncf %37 : vector<8x16xf32> to vector<8x16xbf16>
    %41 = tpu.transpose %40, [1, 0] : vector<8x16xbf16> -> vector<16x8xbf16>
    %cst_26 = arith.constant dense<0.000000e+00> : vector<8x8xf32>
    %42 = tpu.matmul %39, %41, %cst_26 {dimension_numbers = #tpu.dot_dimension_numbers<[1], [0], [0], [1], [0, 0, 1, 1], [], []>} : vector<8x16xbf16>, vector<16x8xbf16>, vector<8x8xf32> -> vector<8x8xf32>
    %cst_27 = arith.constant 2.500000e-01 : f32
    %43 = vector.broadcast %cst_27 : f32 to vector<8x8xf32>
    %44 = arith.mulf %42, %43 : vector<8x8xf32>
    %45 = arith.addf %44, %25 : vector<8x8xf32>
    %cst_28 = arith.constant dense<0xFF800000> : vector<8xf32>
    %46 = vector.multi_reduction <maximumf>, %45, %cst_28 [1] : vector<8x8xf32> to vector<8xf32>
    %47 = vector.shape_cast %46 : vector<8xf32> to vector<8x1xf32>
    %48 = vector.broadcast %47 : vector<8x1xf32> to vector<8x8xf32>
    %49 = arith.subf %45, %48 : vector<8x8xf32>
    %50 = math.exp %49 : vector<8x8xf32>
    %cst_29 = arith.constant dense<0.000000e+00> : vector<8xf32>
    %51 = vector.multi_reduction <add>, %50, %cst_29 [1] : vector<8x8xf32> to vector<8xf32>
    %52 = vector.shape_cast %51 : vector<8xf32> to vector<8x1xf32>
    %53 = tpu.reciprocal %52 {approx = true} : vector<8x1xf32> -> vector<8x1xf32>
    %54 = vector.broadcast %53 : vector<8x1xf32> to vector<8x8xf32>
    %55 = arith.mulf %50, %54 : vector<8x8xf32>
    %56 = arith.truncf %55 : vector<8x8xf32> to vector<8x8xbf16>
    %57 = arith.truncf %38 : vector<8x16xf32> to vector<8x16xbf16>
    %cst_30 = arith.constant dense<0.000000e+00> : vector<8x16xf32>
    %58 = tpu.matmul %56, %57, %cst_30 {dimension_numbers = #tpu.dot_dimension_numbers<[1], [0], [0], [1], [0, 0, 1, 1], [], []>} : vector<8x8xbf16>, vector<8x16xbf16>, vector<8x16xf32> -> vector<8x16xf32>
    %59 = vector.extract_strided_slice %35 {offsets = [0, 16], sizes = [8, 16], strides = [1, 1]} : vector<8x96xf32> to vector<8x16xf32>
    %60 = vector.extract_strided_slice %35 {offsets = [0, 48], sizes = [8, 16], strides = [1, 1]} : vector<8x96xf32> to vector<8x16xf32>
    %61 = vector.extract_strided_slice %35 {offsets = [0, 80], sizes = [8, 16], strides = [1, 1]} : vector<8x96xf32> to vector<8x16xf32>
    %62 = arith.truncf %59 : vector<8x16xf32> to vector<8x16xbf16>
    %63 = arith.truncf %60 : vector<8x16xf32> to vector<8x16xbf16>
    %64 = tpu.transpose %63, [1, 0] : vector<8x16xbf16> -> vector<16x8xbf16>
    %cst_31 = arith.constant dense<0.000000e+00> : vector<8x8xf32>
    %65 = tpu.matmul %62, %64, %cst_31 {dimension_numbers = #tpu.dot_dimension_numbers<[1], [0], [0], [1], [0, 0, 1, 1], [], []>} : vector<8x16xbf16>, vector<16x8xbf16>, vector<8x8xf32> -> vector<8x8xf32>
    %cst_32 = arith.constant 2.500000e-01 : f32
    %66 = vector.broadcast %cst_32 : f32 to vector<8x8xf32>
    %67 = arith.mulf %65, %66 : vector<8x8xf32>
    %68 = arith.addf %67, %25 : vector<8x8xf32>
    %cst_33 = arith.constant dense<0xFF800000> : vector<8xf32>
    %69 = vector.multi_reduction <maximumf>, %68, %cst_33 [1] : vector<8x8xf32> to vector<8xf32>
    %70 = vector.shape_cast %69 : vector<8xf32> to vector<8x1xf32>
    %71 = vector.broadcast %70 : vector<8x1xf32> to vector<8x8xf32>
    %72 = arith.subf %68, %71 : vector<8x8xf32>
    %73 = math.exp %72 : vector<8x8xf32>
    %cst_34 = arith.constant dense<0.000000e+00> : vector<8xf32>
    %74 = vector.multi_reduction <add>, %73, %cst_34 [1] : vector<8x8xf32> to vector<8xf32>
    %75 = vector.shape_cast %74 : vector<8xf32> to vector<8x1xf32>
    %76 = tpu.reciprocal %75 {approx = true} : vector<8x1xf32> -> vector<8x1xf32>
    %77 = vector.broadcast %76 : vector<8x1xf32> to vector<8x8xf32>
    %78 = arith.mulf %73, %77 : vector<8x8xf32>
    %79 = arith.truncf %78 : vector<8x8xf32> to vector<8x8xbf16>
    %80 = arith.truncf %61 : vector<8x16xf32> to vector<8x16xbf16>
    %cst_35 = arith.constant dense<0.000000e+00> : vector<8x16xf32>
    %81 = tpu.matmul %79, %80, %cst_35 {dimension_numbers = #tpu.dot_dimension_numbers<[1], [0], [0], [1], [0, 0, 1, 1], [], []>} : vector<8x8xbf16>, vector<8x16xbf16>, vector<8x16xf32> -> vector<8x16xf32>
    %82 = tpu.concatenate %58, %81 in 1 : vector<8x16xf32>, vector<8x16xf32> -> vector<8x32xf32>
    %83 = arith.truncf %82 : vector<8x32xf32> to vector<8x32xbf16>
    %cst_36 = arith.constant dense<0.000000e+00> : vector<8x32xf32>
    %84 = tpu.matmul %83, %29, %cst_36 {dimension_numbers = #tpu.dot_dimension_numbers<[1], [0], [0], [1], [0, 0, 1, 1], [], []>} : vector<8x32xbf16>, vector<32x32xbf16>, vector<8x32xf32> -> vector<8x32xf32>
    %c0_37 = arith.constant 0 : index
    %c0_38 = arith.constant 0 : index
    %c0_39 = arith.constant 0 : index
    %85 = vector.load %arg11[%c0_37, %c0_38, %c0_39] : memref<2x1x32xf32, #tpu.memory_space<vmem>>, vector<1x1x32xf32>
    %86 = vector.shape_cast %85 : vector<1x1x32xf32> to vector<1x32xf32>
    %87 = vector.broadcast %86 : vector<1x32xf32> to vector<8x32xf32>
    %88 = arith.addf %84, %87 : vector<8x32xf32>
    %89 = arith.addf %24, %88 : vector<8x32xf32>
    %c0_40 = arith.constant 0 : index
    %c0_41 = arith.constant 0 : index
    %c0_42 = arith.constant 0 : index
    %90 = vector.load %arg12[%c0_40, %c0_41, %c0_42] : memref<2x1x32xf32, #tpu.memory_space<vmem>>, vector<1x1x32xf32>
    %91 = vector.shape_cast %90 : vector<1x1x32xf32> to vector<1x32xf32>
    %c0_43 = arith.constant 0 : index
    %c0_44 = arith.constant 0 : index
    %c0_45 = arith.constant 0 : index
    %92 = vector.load %arg13[%c0_43, %c0_44, %c0_45] : memref<2x1x32xf32, #tpu.memory_space<vmem>>, vector<1x1x32xf32>
    %93 = vector.shape_cast %92 : vector<1x1x32xf32> to vector<1x32xf32>
    %cst_46 = arith.constant dense<0.000000e+00> : vector<8xf32>
    %94 = vector.multi_reduction <add>, %89, %cst_46 [1] : vector<8x32xf32> to vector<8xf32>
    %95 = vector.shape_cast %94 : vector<8xf32> to vector<8x1xf32>
    %cst_47 = arith.constant 3.200000e+01 : f32
    %96 = vector.broadcast %cst_47 : f32 to vector<8x1xf32>
    %97 = arith.divf %95, %96 : vector<8x1xf32>
    %98 = vector.broadcast %97 : vector<8x1xf32> to vector<8x32xf32>
    %99 = arith.subf %89, %98 : vector<8x32xf32>
    %100 = arith.mulf %99, %99 : vector<8x32xf32>
    %cst_48 = arith.constant dense<0.000000e+00> : vector<8xf32>
    %101 = vector.multi_reduction <add>, %100, %cst_48 [1] : vector<8x32xf32> to vector<8xf32>
    %102 = vector.shape_cast %101 : vector<8xf32> to vector<8x1xf32>
    %cst_49 = arith.constant 3.200000e+01 : f32
    %103 = vector.broadcast %cst_49 : f32 to vector<8x1xf32>
    %104 = arith.divf %102, %103 : vector<8x1xf32>
    %105 = vector.broadcast %97 : vector<8x1xf32> to vector<8x32xf32>
    %106 = arith.subf %89, %105 : vector<8x32xf32>
    %cst_50 = arith.constant 9.99999974E-6 : f32
    %107 = vector.broadcast %cst_50 : f32 to vector<8x1xf32>
    %108 = arith.addf %104, %107 : vector<8x1xf32>
    %109 = math.rsqrt %108 : vector<8x1xf32>
    %110 = vector.broadcast %109 : vector<8x1xf32> to vector<8x32xf32>
    %111 = arith.mulf %106, %110 : vector<8x32xf32>
    %112 = vector.broadcast %91 : vector<1x32xf32> to vector<8x32xf32>
    %113 = arith.mulf %111, %112 : vector<8x32xf32>
    %114 = vector.broadcast %93 : vector<1x32xf32> to vector<8x32xf32>
    %115 = arith.addf %113, %114 : vector<8x32xf32>
    %116 = arith.truncf %115 : vector<8x32xf32> to vector<8x32xbf16>
    %c0_51 = arith.constant 0 : index
    %c0_52 = arith.constant 0 : index
    %c0_53 = arith.constant 0 : index
    %117 = vector.load %arg14[%c0_51, %c0_52, %c0_53] : memref<2x32x64xbf16, #tpu.memory_space<vmem>>, vector<1x32x64xbf16>
    %118 = vector.shape_cast %117 : vector<1x32x64xbf16> to vector<32x64xbf16>
    %cst_54 = arith.constant dense<0.000000e+00> : vector<8x64xf32>
    %119 = tpu.matmul %116, %118, %cst_54 {dimension_numbers = #tpu.dot_dimension_numbers<[1], [0], [0], [1], [0, 0, 1, 1], [], []>} : vector<8x32xbf16>, vector<32x64xbf16>, vector<8x64xf32> -> vector<8x64xf32>
    %c0_55 = arith.constant 0 : index
    %c0_56 = arith.constant 0 : index
    %c0_57 = arith.constant 0 : index
    %120 = vector.load %arg15[%c0_55, %c0_56, %c0_57] : memref<2x1x64xf32, #tpu.memory_space<vmem>>, vector<1x1x64xf32>
    %121 = vector.shape_cast %120 : vector<1x1x64xf32> to vector<1x64xf32>
    %122 = vector.broadcast %121 : vector<1x64xf32> to vector<8x64xf32>
    %123 = arith.addf %119, %122 : vector<8x64xf32>
    %cst_58 = arith.constant 0.000000e+00 : f32
    %124 = vector.broadcast %cst_58 : f32 to vector<8x64xf32>
    %125 = arith.maximumf %123, %124 : vector<8x64xf32>
    %126 = arith.truncf %125 : vector<8x64xf32> to vector<8x64xbf16>
    %c0_59 = arith.constant 0 : index
    %c0_60 = arith.constant 0 : index
    %c0_61 = arith.constant 0 : index
    %127 = vector.load %arg16[%c0_59, %c0_60, %c0_61] : memref<2x64x32xbf16, #tpu.memory_space<vmem>>, vector<1x64x32xbf16>
    %128 = vector.shape_cast %127 : vector<1x64x32xbf16> to vector<64x32xbf16>
    %cst_62 = arith.constant dense<0.000000e+00> : vector<8x32xf32>
    %129 = tpu.matmul %126, %128, %cst_62 {dimension_numbers = #tpu.dot_dimension_numbers<[1], [0], [0], [1], [0, 0, 1, 1], [], []>} : vector<8x64xbf16>, vector<64x32xbf16>, vector<8x32xf32> -> vector<8x32xf32>
    %c0_63 = arith.constant 0 : index
    %c0_64 = arith.constant 0 : index
    %c0_65 = arith.constant 0 : index
    %130 = vector.load %arg17[%c0_63, %c0_64, %c0_65] : memref<2x1x32xf32, #tpu.memory_space<vmem>>, vector<1x1x32xf32>
    %131 = vector.shape_cast %130 : vector<1x1x32xf32> to vector<1x32xf32>
    %132 = vector.broadcast %131 : vector<1x32xf32> to vector<8x32xf32>
    %133 = arith.addf %129, %132 : vector<8x32xf32>
    %134 = arith.addf %115, %133 : vector<8x32xf32>
    %c0_66 = arith.constant 0 : index
    %c0_67 = arith.constant 0 : index
    %c0_68 = arith.constant 0 : index
    %135 = vector.load %arg18[%c0_66, %c0_67, %c0_68] : memref<2x1x32xf32, #tpu.memory_space<vmem>>, vector<1x1x32xf32>
    %136 = vector.shape_cast %135 : vector<1x1x32xf32> to vector<1x32xf32>
    %c0_69 = arith.constant 0 : index
    %c0_70 = arith.constant 0 : index
    %c0_71 = arith.constant 0 : index
    %137 = vector.load %arg19[%c0_69, %c0_70, %c0_71] : memref<2x1x32xf32, #tpu.memory_space<vmem>>, vector<1x1x32xf32>
    %138 = vector.shape_cast %137 : vector<1x1x32xf32> to vector<1x32xf32>
    %cst_72 = arith.constant dense<0.000000e+00> : vector<8xf32>
    %139 = vector.multi_reduction <add>, %134, %cst_72 [1] : vector<8x32xf32> to vector<8xf32>
    %140 = vector.shape_cast %139 : vector<8xf32> to vector<8x1xf32>
    %cst_73 = arith.constant 3.200000e+01 : f32
    %141 = vector.broadcast %cst_73 : f32 to vector<8x1xf32>
    %142 = arith.divf %140, %141 : vector<8x1xf32>
    %143 = vector.broadcast %142 : vector<8x1xf32> to vector<8x32xf32>
    %144 = arith.subf %134, %143 : vector<8x32xf32>
    %145 = arith.mulf %144, %144 : vector<8x32xf32>
    %cst_74 = arith.constant dense<0.000000e+00> : vector<8xf32>
    %146 = vector.multi_reduction <add>, %145, %cst_74 [1] : vector<8x32xf32> to vector<8xf32>
    %147 = vector.shape_cast %146 : vector<8xf32> to vector<8x1xf32>
    %cst_75 = arith.constant 3.200000e+01 : f32
    %148 = vector.broadcast %cst_75 : f32 to vector<8x1xf32>
    %149 = arith.divf %147, %148 : vector<8x1xf32>
    %150 = vector.broadcast %142 : vector<8x1xf32> to vector<8x32xf32>
    %151 = arith.subf %134, %150 : vector<8x32xf32>
    %cst_76 = arith.constant 9.99999974E-6 : f32
    %152 = vector.broadcast %cst_76 : f32 to vector<8x1xf32>
    %153 = arith.addf %149, %152 : vector<8x1xf32>
    %154 = math.rsqrt %153 : vector<8x1xf32>
    %155 = vector.broadcast %154 : vector<8x1xf32> to vector<8x32xf32>
    %156 = arith.mulf %151, %155 : vector<8x32xf32>
    %157 = vector.broadcast %136 : vector<1x32xf32> to vector<8x32xf32>
    %158 = arith.mulf %156, %157 : vector<8x32xf32>
    %159 = vector.broadcast %138 : vector<1x32xf32> to vector<8x32xf32>
    %160 = arith.addf %158, %159 : vector<8x32xf32>
    %c1 = arith.constant 1 : index
    %c0_77 = arith.constant 0 : index
    %c0_78 = arith.constant 0 : index
    %161 = vector.load %arg8[%c1, %c0_77, %c0_78] : memref<2x32x96xbf16, #tpu.memory_space<vmem>>, vector<1x32x96xbf16>
    %162 = vector.shape_cast %161 : vector<1x32x96xbf16> to vector<32x96xbf16>
    %c1_79 = arith.constant 1 : index
    %c0_80 = arith.constant 0 : index
    %c0_81 = arith.constant 0 : index
    %163 = vector.load %arg10[%c1_79, %c0_80, %c0_81] : memref<2x32x32xbf16, #tpu.memory_space<vmem>>, vector<1x32x32xbf16>
    %164 = vector.shape_cast %163 : vector<1x32x32xbf16> to vector<32x32xbf16>
    %165 = arith.truncf %160 : vector<8x32xf32> to vector<8x32xbf16>
    %cst_82 = arith.constant dense<0.000000e+00> : vector<8x96xf32>
    %166 = tpu.matmul %165, %162, %cst_82 {dimension_numbers = #tpu.dot_dimension_numbers<[1], [0], [0], [1], [0, 0, 1, 1], [], []>} : vector<8x32xbf16>, vector<32x96xbf16>, vector<8x96xf32> -> vector<8x96xf32>
    %c1_83 = arith.constant 1 : index
    %c0_84 = arith.constant 0 : index
    %c0_85 = arith.constant 0 : index
    %167 = vector.load %arg9[%c1_83, %c0_84, %c0_85] : memref<2x1x96xf32, #tpu.memory_space<vmem>>, vector<1x1x96xf32>
    %168 = vector.shape_cast %167 : vector<1x1x96xf32> to vector<1x96xf32>
    %169 = vector.broadcast %168 : vector<1x96xf32> to vector<8x96xf32>
    %170 = arith.addf %166, %169 : vector<8x96xf32>
    %171 = vector.extract_strided_slice %170 {offsets = [0, 0], sizes = [8, 16], strides = [1, 1]} : vector<8x96xf32> to vector<8x16xf32>
    %172 = vector.extract_strided_slice %170 {offsets = [0, 32], sizes = [8, 16], strides = [1, 1]} : vector<8x96xf32> to vector<8x16xf32>
    %173 = vector.extract_strided_slice %170 {offsets = [0, 64], sizes = [8, 16], strides = [1, 1]} : vector<8x96xf32> to vector<8x16xf32>
    %174 = arith.truncf %171 : vector<8x16xf32> to vector<8x16xbf16>
    %175 = arith.truncf %172 : vector<8x16xf32> to vector<8x16xbf16>
    %176 = tpu.transpose %175, [1, 0] : vector<8x16xbf16> -> vector<16x8xbf16>
    %cst_86 = arith.constant dense<0.000000e+00> : vector<8x8xf32>
    %177 = tpu.matmul %174, %176, %cst_86 {dimension_numbers = #tpu.dot_dimension_numbers<[1], [0], [0], [1], [0, 0, 1, 1], [], []>} : vector<8x16xbf16>, vector<16x8xbf16>, vector<8x8xf32> -> vector<8x8xf32>
    %cst_87 = arith.constant 2.500000e-01 : f32
    %178 = vector.broadcast %cst_87 : f32 to vector<8x8xf32>
    %179 = arith.mulf %177, %178 : vector<8x8xf32>
    %180 = arith.addf %179, %25 : vector<8x8xf32>
    %cst_88 = arith.constant dense<0xFF800000> : vector<8xf32>
    %181 = vector.multi_reduction <maximumf>, %180, %cst_88 [1] : vector<8x8xf32> to vector<8xf32>
    %182 = vector.shape_cast %181 : vector<8xf32> to vector<8x1xf32>
    %183 = vector.broadcast %182 : vector<8x1xf32> to vector<8x8xf32>
    %184 = arith.subf %180, %183 : vector<8x8xf32>
    %185 = math.exp %184 : vector<8x8xf32>
    %cst_89 = arith.constant dense<0.000000e+00> : vector<8xf32>
    %186 = vector.multi_reduction <add>, %185, %cst_89 [1] : vector<8x8xf32> to vector<8xf32>
    %187 = vector.shape_cast %186 : vector<8xf32> to vector<8x1xf32>
    %188 = tpu.reciprocal %187 {approx = true} : vector<8x1xf32> -> vector<8x1xf32>
    %189 = vector.broadcast %188 : vector<8x1xf32> to vector<8x8xf32>
    %190 = arith.mulf %185, %189 : vector<8x8xf32>
    %191 = arith.truncf %190 : vector<8x8xf32> to vector<8x8xbf16>
    %192 = arith.truncf %173 : vector<8x16xf32> to vector<8x16xbf16>
    %cst_90 = arith.constant dense<0.000000e+00> : vector<8x16xf32>
    %193 = tpu.matmul %191, %192, %cst_90 {dimension_numbers = #tpu.dot_dimension_numbers<[1], [0], [0], [1], [0, 0, 1, 1], [], []>} : vector<8x8xbf16>, vector<8x16xbf16>, vector<8x16xf32> -> vector<8x16xf32>
    %194 = vector.extract_strided_slice %170 {offsets = [0, 16], sizes = [8, 16], strides = [1, 1]} : vector<8x96xf32> to vector<8x16xf32>
    %195 = vector.extract_strided_slice %170 {offsets = [0, 48], sizes = [8, 16], strides = [1, 1]} : vector<8x96xf32> to vector<8x16xf32>
    %196 = vector.extract_strided_slice %170 {offsets = [0, 80], sizes = [8, 16], strides = [1, 1]} : vector<8x96xf32> to vector<8x16xf32>
    %197 = arith.truncf %194 : vector<8x16xf32> to vector<8x16xbf16>
    %198 = arith.truncf %195 : vector<8x16xf32> to vector<8x16xbf16>
    %199 = tpu.transpose %198, [1, 0] : vector<8x16xbf16> -> vector<16x8xbf16>
    %cst_91 = arith.constant dense<0.000000e+00> : vector<8x8xf32>
    %200 = tpu.matmul %197, %199, %cst_91 {dimension_numbers = #tpu.dot_dimension_numbers<[1], [0], [0], [1], [0, 0, 1, 1], [], []>} : vector<8x16xbf16>, vector<16x8xbf16>, vector<8x8xf32> -> vector<8x8xf32>
    %cst_92 = arith.constant 2.500000e-01 : f32
    %201 = vector.broadcast %cst_92 : f32 to vector<8x8xf32>
    %202 = arith.mulf %200, %201 : vector<8x8xf32>
    %203 = arith.addf %202, %25 : vector<8x8xf32>
    %cst_93 = arith.constant dense<0xFF800000> : vector<8xf32>
    %204 = vector.multi_reduction <maximumf>, %203, %cst_93 [1] : vector<8x8xf32> to vector<8xf32>
    %205 = vector.shape_cast %204 : vector<8xf32> to vector<8x1xf32>
    %206 = vector.broadcast %205 : vector<8x1xf32> to vector<8x8xf32>
    %207 = arith.subf %203, %206 : vector<8x8xf32>
    %208 = math.exp %207 : vector<8x8xf32>
    %cst_94 = arith.constant dense<0.000000e+00> : vector<8xf32>
    %209 = vector.multi_reduction <add>, %208, %cst_94 [1] : vector<8x8xf32> to vector<8xf32>
    %210 = vector.shape_cast %209 : vector<8xf32> to vector<8x1xf32>
    %211 = tpu.reciprocal %210 {approx = true} : vector<8x1xf32> -> vector<8x1xf32>
    %212 = vector.broadcast %211 : vector<8x1xf32> to vector<8x8xf32>
    %213 = arith.mulf %208, %212 : vector<8x8xf32>
    %214 = arith.truncf %213 : vector<8x8xf32> to vector<8x8xbf16>
    %215 = arith.truncf %196 : vector<8x16xf32> to vector<8x16xbf16>
    %cst_95 = arith.constant dense<0.000000e+00> : vector<8x16xf32>
    %216 = tpu.matmul %214, %215, %cst_95 {dimension_numbers = #tpu.dot_dimension_numbers<[1], [0], [0], [1], [0, 0, 1, 1], [], []>} : vector<8x8xbf16>, vector<8x16xbf16>, vector<8x16xf32> -> vector<8x16xf32>
    %217 = tpu.concatenate %193, %216 in 1 : vector<8x16xf32>, vector<8x16xf32> -> vector<8x32xf32>
    %218 = arith.truncf %217 : vector<8x32xf32> to vector<8x32xbf16>
    %cst_96 = arith.constant dense<0.000000e+00> : vector<8x32xf32>
    %219 = tpu.matmul %218, %164, %cst_96 {dimension_numbers = #tpu.dot_dimension_numbers<[1], [0], [0], [1], [0, 0, 1, 1], [], []>} : vector<8x32xbf16>, vector<32x32xbf16>, vector<8x32xf32> -> vector<8x32xf32>
    %c1_97 = arith.constant 1 : index
    %c0_98 = arith.constant 0 : index
    %c0_99 = arith.constant 0 : index
    %220 = vector.load %arg11[%c1_97, %c0_98, %c0_99] : memref<2x1x32xf32, #tpu.memory_space<vmem>>, vector<1x1x32xf32>
    %221 = vector.shape_cast %220 : vector<1x1x32xf32> to vector<1x32xf32>
    %222 = vector.broadcast %221 : vector<1x32xf32> to vector<8x32xf32>
    %223 = arith.addf %219, %222 : vector<8x32xf32>
    %224 = arith.addf %160, %223 : vector<8x32xf32>
    %c1_100 = arith.constant 1 : index
    %c0_101 = arith.constant 0 : index
    %c0_102 = arith.constant 0 : index
    %225 = vector.load %arg12[%c1_100, %c0_101, %c0_102] : memref<2x1x32xf32, #tpu.memory_space<vmem>>, vector<1x1x32xf32>
    %226 = vector.shape_cast %225 : vector<1x1x32xf32> to vector<1x32xf32>
    %c1_103 = arith.constant 1 : index
    %c0_104 = arith.constant 0 : index
    %c0_105 = arith.constant 0 : index
    %227 = vector.load %arg13[%c1_103, %c0_104, %c0_105] : memref<2x1x32xf32, #tpu.memory_space<vmem>>, vector<1x1x32xf32>
    %228 = vector.shape_cast %227 : vector<1x1x32xf32> to vector<1x32xf32>
    %cst_106 = arith.constant dense<0.000000e+00> : vector<8xf32>
    %229 = vector.multi_reduction <add>, %224, %cst_106 [1] : vector<8x32xf32> to vector<8xf32>
    %230 = vector.shape_cast %229 : vector<8xf32> to vector<8x1xf32>
    %cst_107 = arith.constant 3.200000e+01 : f32
    %231 = vector.broadcast %cst_107 : f32 to vector<8x1xf32>
    %232 = arith.divf %230, %231 : vector<8x1xf32>
    %233 = vector.broadcast %232 : vector<8x1xf32> to vector<8x32xf32>
    %234 = arith.subf %224, %233 : vector<8x32xf32>
    %235 = arith.mulf %234, %234 : vector<8x32xf32>
    %cst_108 = arith.constant dense<0.000000e+00> : vector<8xf32>
    %236 = vector.multi_reduction <add>, %235, %cst_108 [1] : vector<8x32xf32> to vector<8xf32>
    %237 = vector.shape_cast %236 : vector<8xf32> to vector<8x1xf32>
    %cst_109 = arith.constant 3.200000e+01 : f32
    %238 = vector.broadcast %cst_109 : f32 to vector<8x1xf32>
    %239 = arith.divf %237, %238 : vector<8x1xf32>
    %240 = vector.broadcast %232 : vector<8x1xf32> to vector<8x32xf32>
    %241 = arith.subf %224, %240 : vector<8x32xf32>
    %cst_110 = arith.constant 9.99999974E-6 : f32
    %242 = vector.broadcast %cst_110 : f32 to vector<8x1xf32>
    %243 = arith.addf %239, %242 : vector<8x1xf32>
    %244 = math.rsqrt %243 : vector<8x1xf32>
    %245 = vector.broadcast %244 : vector<8x1xf32> to vector<8x32xf32>
    %246 = arith.mulf %241, %245 : vector<8x32xf32>
    %247 = vector.broadcast %226 : vector<1x32xf32> to vector<8x32xf32>
    %248 = arith.mulf %246, %247 : vector<8x32xf32>
    %249 = vector.broadcast %228 : vector<1x32xf32> to vector<8x32xf32>
    %250 = arith.addf %248, %249 : vector<8x32xf32>
    %251 = arith.truncf %250 : vector<8x32xf32> to vector<8x32xbf16>
    %c1_111 = arith.constant 1 : index
    %c0_112 = arith.constant 0 : index
    %c0_113 = arith.constant 0 : index
    %252 = vector.load %arg14[%c1_111, %c0_112, %c0_113] : memref<2x32x64xbf16, #tpu.memory_space<vmem>>, vector<1x32x64xbf16>
    %253 = vector.shape_cast %252 : vector<1x32x64xbf16> to vector<32x64xbf16>
    %cst_114 = arith.constant dense<0.000000e+00> : vector<8x64xf32>
    %254 = tpu.matmul %251, %253, %cst_114 {dimension_numbers = #tpu.dot_dimension_numbers<[1], [0], [0], [1], [0, 0, 1, 1], [], []>} : vector<8x32xbf16>, vector<32x64xbf16>, vector<8x64xf32> -> vector<8x64xf32>
    %c1_115 = arith.constant 1 : index
    %c0_116 = arith.constant 0 : index
    %c0_117 = arith.constant 0 : index
    %255 = vector.load %arg15[%c1_115, %c0_116, %c0_117] : memref<2x1x64xf32, #tpu.memory_space<vmem>>, vector<1x1x64xf32>
    %256 = vector.shape_cast %255 : vector<1x1x64xf32> to vector<1x64xf32>
    %257 = vector.broadcast %256 : vector<1x64xf32> to vector<8x64xf32>
    %258 = arith.addf %254, %257 : vector<8x64xf32>
    %cst_118 = arith.constant 0.000000e+00 : f32
    %259 = vector.broadcast %cst_118 : f32 to vector<8x64xf32>
    %260 = arith.maximumf %258, %259 : vector<8x64xf32>
    %261 = arith.truncf %260 : vector<8x64xf32> to vector<8x64xbf16>
    %c1_119 = arith.constant 1 : index
    %c0_120 = arith.constant 0 : index
    %c0_121 = arith.constant 0 : index
    %262 = vector.load %arg16[%c1_119, %c0_120, %c0_121] : memref<2x64x32xbf16, #tpu.memory_space<vmem>>, vector<1x64x32xbf16>
    %263 = vector.shape_cast %262 : vector<1x64x32xbf16> to vector<64x32xbf16>
    %cst_122 = arith.constant dense<0.000000e+00> : vector<8x32xf32>
    %264 = tpu.matmul %261, %263, %cst_122 {dimension_numbers = #tpu.dot_dimension_numbers<[1], [0], [0], [1], [0, 0, 1, 1], [], []>} : vector<8x64xbf16>, vector<64x32xbf16>, vector<8x32xf32> -> vector<8x32xf32>
    %c1_123 = arith.constant 1 : index
    %c0_124 = arith.constant 0 : index
    %c0_125 = arith.constant 0 : index
    %265 = vector.load %arg17[%c1_123, %c0_124, %c0_125] : memref<2x1x32xf32, #tpu.memory_space<vmem>>, vector<1x1x32xf32>
    %266 = vector.shape_cast %265 : vector<1x1x32xf32> to vector<1x32xf32>
    %267 = vector.broadcast %266 : vector<1x32xf32> to vector<8x32xf32>
    %268 = arith.addf %264, %267 : vector<8x32xf32>
    %269 = arith.addf %250, %268 : vector<8x32xf32>
    %c1_126 = arith.constant 1 : index
    %c0_127 = arith.constant 0 : index
    %c0_128 = arith.constant 0 : index
    %270 = vector.load %arg18[%c1_126, %c0_127, %c0_128] : memref<2x1x32xf32, #tpu.memory_space<vmem>>, vector<1x1x32xf32>
    %271 = vector.shape_cast %270 : vector<1x1x32xf32> to vector<1x32xf32>
    %c1_129 = arith.constant 1 : index
    %c0_130 = arith.constant 0 : index
    %c0_131 = arith.constant 0 : index
    %272 = vector.load %arg19[%c1_129, %c0_130, %c0_131] : memref<2x1x32xf32, #tpu.memory_space<vmem>>, vector<1x1x32xf32>
    %273 = vector.shape_cast %272 : vector<1x1x32xf32> to vector<1x32xf32>
    %cst_132 = arith.constant dense<0.000000e+00> : vector<8xf32>
    %274 = vector.multi_reduction <add>, %269, %cst_132 [1] : vector<8x32xf32> to vector<8xf32>
    %275 = vector.shape_cast %274 : vector<8xf32> to vector<8x1xf32>
    %cst_133 = arith.constant 3.200000e+01 : f32
    %276 = vector.broadcast %cst_133 : f32 to vector<8x1xf32>
    %277 = arith.divf %275, %276 : vector<8x1xf32>
    %278 = vector.broadcast %277 : vector<8x1xf32> to vector<8x32xf32>
    %279 = arith.subf %269, %278 : vector<8x32xf32>
    %280 = arith.mulf %279, %279 : vector<8x32xf32>
    %cst_134 = arith.constant dense<0.000000e+00> : vector<8xf32>
    %281 = vector.multi_reduction <add>, %280, %cst_134 [1] : vector<8x32xf32> to vector<8xf32>
    %282 = vector.shape_cast %281 : vector<8xf32> to vector<8x1xf32>
    %cst_135 = arith.constant 3.200000e+01 : f32
    %283 = vector.broadcast %cst_135 : f32 to vector<8x1xf32>
    %284 = arith.divf %282, %283 : vector<8x1xf32>
    %285 = vector.broadcast %277 : vector<8x1xf32> to vector<8x32xf32>
    %286 = arith.subf %269, %285 : vector<8x32xf32>
    %cst_136 = arith.constant 9.99999974E-6 : f32
    %287 = vector.broadcast %cst_136 : f32 to vector<8x1xf32>
    %288 = arith.addf %284, %287 : vector<8x1xf32>
    %289 = math.rsqrt %288 : vector<8x1xf32>
    %290 = vector.broadcast %289 : vector<8x1xf32> to vector<8x32xf32>
    %291 = arith.mulf %286, %290 : vector<8x32xf32>
    %292 = vector.broadcast %271 : vector<1x32xf32> to vector<8x32xf32>
    %293 = arith.mulf %291, %292 : vector<8x32xf32>
    %294 = vector.broadcast %273 : vector<1x32xf32> to vector<8x32xf32>
    %295 = arith.addf %293, %294 : vector<8x32xf32>
    %296 = vector.extract_strided_slice %295 {offsets = [4, 0], sizes = [4, 32], strides = [1, 1]} : vector<8x32xf32> to vector<4x32xf32>
    %297 = arith.truncf %296 : vector<4x32xf32> to vector<4x32xbf16>
    %c0_137 = arith.constant 0 : index
    %c0_138 = arith.constant 0 : index
    %298 = vector.load %arg20[%c0_137, %c0_138] : memref<32x2xbf16, #tpu.memory_space<vmem>>, vector<32x2xbf16>
    %cst_139 = arith.constant dense<0.000000e+00> : vector<4x2xf32>
    %299 = tpu.matmul %297, %298, %cst_139 {dimension_numbers = #tpu.dot_dimension_numbers<[1], [0], [0], [1], [0, 0, 1, 1], [], []>} : vector<4x32xbf16>, vector<32x2xbf16>, vector<4x2xf32> -> vector<4x2xf32>
    %c0_140 = arith.constant 0 : index
    %c0_141 = arith.constant 0 : index
    %300 = vector.load %arg21[%c0_140, %c0_141] : memref<1x2xf32, #tpu.memory_space<vmem>>, vector<1x2xf32>
    %301 = vector.broadcast %300 : vector<1x2xf32> to vector<4x2xf32>
    %302 = arith.addf %299, %301 : vector<4x2xf32>
    %c0_142 = arith.constant 0 : index
    %c0_143 = arith.constant 0 : index
    %c0_144 = arith.constant 0 : index
    %303 = vector.load %arg22[%c0_142, %c0_143, %c0_144] : memref<1x4x2xf32, #tpu.memory_space<vmem>>, vector<1x4x2xf32>
    %304 = vector.shape_cast %303 : vector<1x4x2xf32> to vector<4x2xf32>
    %305 = vector.shape_cast %302 : vector<4x2xf32> to vector<1x4x2xf32>
    tpu.vector_store %arg22[%c0_142, %c0_143, %c0_144], %305 {strides = array<i32>} : memref<1x4x2xf32, #tpu.memory_space<vmem>>, vector<1x4x2xf32>,
    return
  }
  func.func @transform_0(%arg0: i32) -> (i32, i32, i32) {
    %c0_i32 = arith.constant 0 : i32
    %c0_i32_0 = arith.constant 0 : i32
    %c0_i32_1 = arith.constant 0 : i32
    return %arg0, %c0_i32, %c0_i32_0 : i32, i32, i32
  }
  func.func @transform_1(%arg0: i32) -> (i32, i32, i32) {
    %c0_i32 = arith.constant 0 : i32
    %c0_i32_0 = arith.constant 0 : i32
    %c0_i32_1 = arith.constant 0 : i32
    return %arg0, %c0_i32, %c0_i32_0 : i32, i32, i32
  }
  func.func @transform_2(%arg0: i32) -> (i32, i32) {
    %c0_i32 = arith.constant 0 : i32
    %c0_i32_0 = arith.constant 0 : i32
    %c0_i32_1 = arith.constant 0 : i32
    return %c0_i32, %c0_i32_0 : i32, i32
  }
  func.func @transform_3(%arg0: i32) -> (i32, i32) {
    %c0_i32 = arith.constant 0 : i32
    %c0_i32_0 = arith.constant 0 : i32
    %c0_i32_1 = arith.constant 0 : i32
    return %c0_i32, %c0_i32_0 : i32, i32
  }
  func.func @transform_4(%arg0: i32) -> (i32, i32) {
    %c0_i32 = arith.constant 0 : i32
    %c0_i32_0 = arith.constant 0 : i32
    %c0_i32_1 = arith.constant 0 : i32
    return %c0_i32, %c0_i32_0 : i32, i32
  }
  func.func @transform_5(%arg0: i32) -> (i32, i32) {
    %c0_i32 = arith.constant 0 : i32
    %c0_i32_0 = arith.constant 0 : i32
    %c0_i32_1 = arith.constant 0 : i32
    return %c0_i32, %c0_i32_0 : i32, i32
  }
  func.func @transform_6(%arg0: i32) -> (i32, i32) {
    %c0_i32 = arith.constant 0 : i32
    %c0_i32_0 = arith.constant 0 : i32
    %c0_i32_1 = arith.constant 0 : i32
    return %c0_i32, %c0_i32_0 : i32, i32
  }
  func.func @transform_7(%arg0: i32) -> (i32, i32, i32) {
    %c0_i32 = arith.constant 0 : i32
    %c0_i32_0 = arith.constant 0 : i32
    %c0_i32_1 = arith.constant 0 : i32
    %c0_i32_2 = arith.constant 0 : i32
    return %c0_i32, %c0_i32_0, %c0_i32_1 : i32, i32, i32
  }
  func.func @transform_8(%arg0: i32) -> (i32, i32, i32) {
    %c0_i32 = arith.constant 0 : i32
    %c0_i32_0 = arith.constant 0 : i32
    %c0_i32_1 = arith.constant 0 : i32
    %c0_i32_2 = arith.constant 0 : i32
    return %c0_i32, %c0_i32_0, %c0_i32_1 : i32, i32, i32
  }
  func.func @transform_9(%arg0: i32) -> (i32, i32, i32) {
    %c0_i32 = arith.constant 0 : i32
    %c0_i32_0 = arith.constant 0 : i32
    %c0_i32_1 = arith.constant 0 : i32
    %c0_i32_2 = arith.constant 0 : i32
    return %c0_i32, %c0_i32_0, %c0_i32_1 : i32, i32, i32
  }
  func.func @transform_10(%arg0: i32) -> (i32, i32, i32) {
    %c0_i32 = arith.constant 0 : i32
    %c0_i32_0 = arith.constant 0 : i32
    %c0_i32_1 = arith.constant 0 : i32
    %c0_i32_2 = arith.constant 0 : i32
    return %c0_i32, %c0_i32_0, %c0_i32_1 : i32, i32, i32
  }
  func.func @transform_11(%arg0: i32) -> (i32, i32, i32) {
    %c0_i32 = arith.constant 0 : i32
    %c0_i32_0 = arith.constant 0 : i32
    %c0_i32_1 = arith.constant 0 : i32
    %c0_i32_2 = arith.constant 0 : i32
    return %c0_i32, %c0_i32_0, %c0_i32_1 : i32, i32, i32
  }
  func.func @transform_12(%arg0: i32) -> (i32, i32, i32) {
    %c0_i32 = arith.constant 0 : i32
    %c0_i32_0 = arith.constant 0 : i32
    %c0_i32_1 = arith.constant 0 : i32
    %c0_i32_2 = arith.constant 0 : i32
    return %c0_i32, %c0_i32_0, %c0_i32_1 : i32, i32, i32
  }
  func.func @transform_13(%arg0: i32) -> (i32, i32, i32) {
    %c0_i32 = arith.constant 0 : i32
    %c0_i32_0 = arith.constant 0 : i32
    %c0_i32_1 = arith.constant 0 : i32
    %c0_i32_2 = arith.constant 0 : i32
    return %c0_i32, %c0_i32_0, %c0_i32_1 : i32, i32, i32
  }
  func.func @transform_14(%arg0: i32) -> (i32, i32, i32) {
    %c0_i32 = arith.constant 0 : i32
    %c0_i32_0 = arith.constant 0 : i32
    %c0_i32_1 = arith.constant 0 : i32
    %c0_i32_2 = arith.constant 0 : i32
    return %c0_i32, %c0_i32_0, %c0_i32_1 : i32, i32, i32
  }
  func.func @transform_15(%arg0: i32) -> (i32, i32, i32) {
    %c0_i32 = arith.constant 0 : i32
    %c0_i32_0 = arith.constant 0 : i32
    %c0_i32_1 = arith.constant 0 : i32
    %c0_i32_2 = arith.constant 0 : i32
    return %c0_i32, %c0_i32_0, %c0_i32_1 : i32, i32, i32
  }
  func.func @transform_16(%arg0: i32) -> (i32, i32, i32) {
    %c0_i32 = arith.constant 0 : i32
    %c0_i32_0 = arith.constant 0 : i32
    %c0_i32_1 = arith.constant 0 : i32
    %c0_i32_2 = arith.constant 0 : i32
    return %c0_i32, %c0_i32_0, %c0_i32_1 : i32, i32, i32
  }
  func.func @transform_17(%arg0: i32) -> (i32, i32, i32) {
    %c0_i32 = arith.constant 0 : i32
    %c0_i32_0 = arith.constant 0 : i32
    %c0_i32_1 = arith.constant 0 : i32
    %c0_i32_2 = arith.constant 0 : i32
    return %c0_i32, %c0_i32_0, %c0_i32_1 : i32, i32, i32
  }
  func.func @transform_18(%arg0: i32) -> (i32, i32, i32) {
    %c0_i32 = arith.constant 0 : i32
    %c0_i32_0 = arith.constant 0 : i32
    %c0_i32_1 = arith.constant 0 : i32
    %c0_i32_2 = arith.constant 0 : i32
    return %c0_i32, %c0_i32_0, %c0_i32_1 : i32, i32, i32
  }
  func.func @transform_19(%arg0: i32) -> (i32, i32) {
    %c0_i32 = arith.constant 0 : i32
    %c0_i32_0 = arith.constant 0 : i32
    %c0_i32_1 = arith.constant 0 : i32
    return %c0_i32, %c0_i32_0 : i32, i32
  }
  func.func @transform_20(%arg0: i32) -> (i32, i32) {
    %c0_i32 = arith.constant 0 : i32
    %c0_i32_0 = arith.constant 0 : i32
    %c0_i32_1 = arith.constant 0 : i32
    return %c0_i32, %c0_i32_0 : i32, i32
  }
  func.func @transform_21(%arg0: i32) -> (i32, i32, i32) {
    %c0_i32 = arith.constant 0 : i32
    %c0_i32_0 = arith.constant 0 : i32
    %c0_i32_1 = arith.constant 0 : i32
    return %arg0, %c0_i32, %c0_i32_0 : i32, i32, i32
  }
}

</mosaic_0001>

<llo_original>
// kernel: nap_forward.1
$region0: #{nap_forward.1}
  #allocation0 [shape = 'u32[]', space=smem, size = 0x4, offset = 0x4, fixed_abs, tag = 'smem constant byte address 0x4 - core index']
  #allocation1 [shape = 'u32[144,128]{1,0:T(1,128)}', space=vmem, size = 0x12000, scoped, tag = 'internal scratch']
  %s0 = inlined_call_operand.vmem [shape: f32[2,8,4], index: 0, kind: input, shape index: {}]
  %s1 = inlined_call_operand.vmem [shape: f32[2,8,1], index: 1, kind: input, shape index: {}]
  %s2 = inlined_call_operand.vmem [shape: f32[8,8], index: 2, kind: input, shape index: {}]
  %s3 = inlined_call_operand.vmem [shape: bf16[4,32], index: 3, kind: input, shape index: {}]
  %s4 = inlined_call_operand.vmem [shape: f32[1,32], index: 4, kind: input, shape index: {}]
  %s5 = inlined_call_operand.vmem [shape: f32[1,32], index: 5, kind: input, shape index: {}]
  %s6 = inlined_call_operand.vmem [shape: f32[1,32], index: 6, kind: input, shape index: {}]
  %s7 = inlined_call_operand.vmem [shape: bf16[2,32,96], index: 7, kind: input, shape index: {}]
  %s8 = inlined_call_operand.vmem [shape: f32[2,1,96], index: 8, kind: input, shape index: {}]
  %s9 = inlined_call_operand.vmem [shape: bf16[2,32,32], index: 9, kind: input, shape index: {}]
  %s10 = inlined_call_operand.vmem [shape: f32[2,1,32], index: 10, kind: input, shape index: {}]
  %s11 = inlined_call_operand.vmem [shape: f32[2,1,32], index: 11, kind: input, shape index: {}]
  %s12 = inlined_call_operand.vmem [shape: f32[2,1,32], index: 12, kind: input, shape index: {}]
  %s13 = inlined_call_operand.vmem [shape: bf16[2,32,64], index: 13, kind: input, shape index: {}]
  %s14 = inlined_call_operand.vmem [shape: f32[2,1,64], index: 14, kind: input, shape index: {}]
  %s15 = inlined_call_operand.vmem [shape: bf16[2,64,32], index: 15, kind: input, shape index: {}]
  %s16 = inlined_call_operand.vmem [shape: f32[2,1,32], index: 16, kind: input, shape index: {}]
  %s17 = inlined_call_operand.vmem [shape: f32[2,1,32], index: 17, kind: input, shape index: {}]
  %s18 = inlined_call_operand.vmem [shape: f32[2,1,32], index: 18, kind: input, shape index: {}]
  %s19 = inlined_call_operand.vmem [shape: bf16[32,2], index: 19, kind: input, shape index: {}]
  %s20 = inlined_call_operand.vmem [shape: f32[1,2], index: 20, kind: input, shape index: {}]
  %s21 = inlined_call_operand.vmem [shape: f32[2,4,2], index: 21, kind: output, shape index: {}]
  %s22 = sld [smem:[#allocation0]]
  $region117: #{nap_forward.1} parent=0
    _
  %s24 = ssub.s32 1, %s22
  %s25 = scalar_select 0, %s24, %s22
  loop: start=0, step=1, limit=4
  $region2: #{nap_forward.1} parent=0 // loop_pre_header
    _
  $region3: #{nap_forward.1} parent=0 // loop_header
    %s27 = sphi 0, %s31
    %p28 = scmp.ge.s32.totalorder %s27, 4
    %s37 = sphi 0, %s39
    %s40 = sphi 0, %s37
    %s41 = sphi 0, %s40
    %s57 = sphi 0, %s41
    %s63 = sphi 0, %s65
    %s66 = sphi 0, %s63
    %s67 = sphi 0, %s66
    %s83 = sphi 0, %s67
    %s87 = sphi 0, %s87
    %s89 = sphi 0, %s87
    %s90 = sphi 0, %s89
    %s104 = sphi 0, %s90
    %s108 = sphi 0, %s108
    %s110 = sphi 0, %s108
    %s111 = sphi 0, %s110
    %s125 = sphi 0, %s111
    %s129 = sphi 0, %s129
    %s131 = sphi 0, %s129
    %s132 = sphi 0, %s131
    %s146 = sphi 0, %s132
    %s150 = sphi 0, %s150
    %s152 = sphi 0, %s150
    %s153 = sphi 0, %s152
    %s167 = sphi 0, %s153
    %s171 = sphi 0, %s171
    %s173 = sphi 0, %s171
    %s174 = sphi 0, %s173
    %s188 = sphi 0, %s174
    %s192 = sphi 0, %s192
    %s194 = sphi 0, %s192
    %s195 = sphi 0, %s194
    %s209 = sphi 0, %s195
    %s213 = sphi 0, %s213
    %s215 = sphi 0, %s213
    %s216 = sphi 0, %s215
    %s230 = sphi 0, %s216
    %s234 = sphi 0, %s234
    %s236 = sphi 0, %s234
    %s237 = sphi 0, %s236
    %s251 = sphi 0, %s237
    %s255 = sphi 0, %s255
    %s257 = sphi 0, %s255
    %s258 = sphi 0, %s257
    %s272 = sphi 0, %s258
    %s276 = sphi 0, %s276
    %s278 = sphi 0, %s276
    %s279 = sphi 0, %s278
    %s293 = sphi 0, %s279
    %s297 = sphi 0, %s297
    %s299 = sphi 0, %s297
    %s300 = sphi 0, %s299
    %s314 = sphi 0, %s300
    %s318 = sphi 0, %s318
    %s320 = sphi 0, %s318
    %s321 = sphi 0, %s320
    %s335 = sphi 0, %s321
    %s339 = sphi 0, %s339
    %s341 = sphi 0, %s339
    %s342 = sphi 0, %s341
    %s356 = sphi 0, %s342
    %s360 = sphi 0, %s360
    %s362 = sphi 0, %s360
    %s363 = sphi 0, %s362
    %s377 = sphi 0, %s363
    %s381 = sphi 0, %s381
    %s383 = sphi 0, %s381
    %s384 = sphi 0, %s383
    %s398 = sphi 0, %s384
    %s402 = sphi 0, %s402
    %s404 = sphi 0, %s402
    %s405 = sphi 0, %s404
    %s419 = sphi 0, %s405
    %s423 = sphi 0, %s423
    %s425 = sphi 0, %s423
    %s426 = sphi 0, %s425
    %s440 = sphi 0, %s426
    %s444 = sphi 0, %s444
    %s446 = sphi 0, %s444
    %s447 = sphi 0, %s446
    %s461 = sphi 0, %s447
    %s465 = sphi 0, %s465
    %s467 = sphi 0, %s465
    %s468 = sphi 0, %s467
    %s482 = sphi 0, %s468
    %s488 = sphi 0, %s490
    %s491 = sphi 0, %s488
    %s492 = sphi 0, %s491
    %s508 = sphi 0, %s492
  $region4: #{nap_forward.1} parent=0 // loop_header_branch
    %30 = sbr.rel (%p28) target = $region8
  $region5: #{nap_forward.1} parent=0 // loop_body
    %s32 = ssub.s32 %s27, 1
    %s33 = ssub.s32 %s27, 2
    %s34 = sadd.s32 %s27, 1
    %s35 = ssub.s32 %s27, %s34
    %p36 = scmp.eq.s32.totalorder %s35, 0
    %s38 = sadd.s32 %s37, 1
    %s39 = scalar_select %p36, %s37, %s38
    %p42 = pneg %p36
    %p43 = scmp.eq.s32.totalorder %s27, 1
    %p44 = por %p42, %p43
    %p45 = scmp.ne.s32.totalorder %s37, %s40
    %p46 = scmp.eq.s32.totalorder %s27, 0
    %p47 = por %p45, %p46
    %p48 = scmp.ne.s32.totalorder %s37, %s40
    %p49 = scmp.eq.s32.totalorder %s32, 1
    %p50 = por %p48, %p49
    %p51 = scmp.ne.s32.totalorder %s40, %s41
    %p52 = scmp.eq.s32.totalorder %s32, 0
    %p53 = por %p51, %p52
    %p54 = scmp.ne.s32.totalorder %s40, %s41
    %p55 = scmp.eq.s32.totalorder %s33, 1
    %p56 = por %p54, %p55
    %p58 = scmp.ne.s32.totalorder %s41, %s57
    %p59 = scmp.eq.s32.totalorder %s33, 0
    %p60 = por %p58, %p59
    %s61 = ssub.s32 %s27, %s34
    %p62 = scmp.eq.s32.totalorder %s61, 0
    %s64 = sadd.s32 %s63, 1
    %s65 = scalar_select %p62, %s63, %s64
    %p68 = pneg %p62
    %p69 = scmp.eq.s32.totalorder %s27, 1
    %p70 = por %p68, %p69
    %p71 = scmp.ne.s32.totalorder %s63, %s66
    %p72 = scmp.eq.s32.totalorder %s27, 0
    %p73 = por %p71, %p72
    %p74 = scmp.ne.s32.totalorder %s63, %s66
    %p75 = scmp.eq.s32.totalorder %s32, 1
    %p76 = por %p74, %p75
    %p77 = scmp.ne.s32.totalorder %s66, %s67
    %p78 = scmp.eq.s32.totalorder %s32, 0
    %p79 = por %p77, %p78
    %p80 = scmp.ne.s32.totalorder %s66, %s67
    %p81 = scmp.eq.s32.totalorder %s33, 1
    %p82 = por %p80, %p81
    %p84 = scmp.ne.s32.totalorder %s67, %s83
    %p85 = scmp.eq.s32.totalorder %s33, 0
    %p86 = por %p84, %p85
    %s88 = sadd.s32 %s87, 1
    %p91 = scmp.eq.s32.totalorder %s27, 1
    %p92 = scmp.ne.s32.totalorder %s87, %s89
    %p93 = scmp.eq.s32.totalorder %s27, 0
    %p94 = por %p92, %p93
    %p95 = scmp.ne.s32.totalorder %s87, %s89
    %p96 = scmp.eq.s32.totalorder %s32, 1
    %p97 = por %p95, %p96
    %p98 = scmp.ne.s32.totalorder %s89, %s90
    %p99 = scmp.eq.s32.totalorder %s32, 0
    %p100 = por %p98, %p99
    %p101 = scmp.ne.s32.totalorder %s89, %s90
    %p102 = scmp.eq.s32.totalorder %s33, 1
    %p103 = por %p101, %p102
    %p105 = scmp.ne.s32.totalorder %s90, %s104
    %p106 = scmp.eq.s32.totalorder %s33, 0
    %p107 = por %p105, %p106
    %s109 = sadd.s32 %s108, 1
    %p112 = scmp.eq.s32.totalorder %s27, 1
    %p113 = scmp.ne.s32.totalorder %s108, %s110
    %p114 = scmp.eq.s32.totalorder %s27, 0
    %p115 = por %p113, %p114
    %p116 = scmp.ne.s32.totalorder %s108, %s110
    %p117 = scmp.eq.s32.totalorder %s32, 1
    %p118 = por %p116, %p117
    %p119 = scmp.ne.s32.totalorder %s110, %s111
    %p120 = scmp.eq.s32.totalorder %s32, 0
    %p121 = por %p119, %p120
    %p122 = scmp.ne.s32.totalorder %s110, %s111
    %p123 = scmp.eq.s32.totalorder %s33, 1
    %p124 = por %p122, %p123
    %p126 = scmp.ne.s32.totalorder %s111, %s125
    %p127 = scmp.eq.s32.totalorder %s33, 0
    %p128 = por %p126, %p127
    %s130 = sadd.s32 %s129, 1
    %p133 = scmp.eq.s32.totalorder %s27, 1
    %p134 = scmp.ne.s32.totalorder %s129, %s131
    %p135 = scmp.eq.s32.totalorder %s27, 0
    %p136 = por %p134, %p135
    %p137 = scmp.ne.s32.totalorder %s129, %s131
    %p138 = scmp.eq.s32.totalorder %s32, 1
    %p139 = por %p137, %p138
    %p140 = scmp.ne.s32.totalorder %s131, %s132
    %p141 = scmp.eq.s32.totalorder %s32, 0
    %p142 = por %p140, %p141
    %p143 = scmp.ne.s32.totalorder %s131, %s132
    %p144 = scmp.eq.s32.totalorder %s33, 1
    %p145 = por %p143, %p144
    %p147 = scmp.ne.s32.totalorder %s132, %s146
    %p148 = scmp.eq.s32.totalorder %s33, 0
    %p149 = por %p147, %p148
    %s151 = sadd.s32 %s150, 1
    %p154 = scmp.eq.s32.totalorder %s27, 1
    %p155 = scmp.ne.s32.totalorder %s150, %s152
    %p156 = scmp.eq.s32.totalorder %s27, 0
    %p157 = por %p155, %p156
    %p158 = scmp.ne.s32.totalorder %s150, %s152
    %p159 = scmp.eq.s32.totalorder %s32, 1
    %p160 = por %p158, %p159
    %p161 = scmp.ne.s32.totalorder %s152, %s153
    %p162 = scmp.eq.s32.totalorder %s32, 0
    %p163 = por %p161, %p162
    %p164 = scmp.ne.s32.totalorder %s152, %s153
    %p165 = scmp.eq.s32.totalorder %s33, 1
    %p166 = por %p164, %p165
    %p168 = scmp.ne.s32.totalorder %s153, %s167
    %p169 = scmp.eq.s32.totalorder %s33, 0
    %p170 = por %p168, %p169
    %s172 = sadd.s32 %s171, 1
    %p175 = scmp.eq.s32.totalorder %s27, 1
    %p176 = scmp.ne.s32.totalorder %s171, %s173
    %p177 = scmp.eq.s32.totalorder %s27, 0
    %p178 = por %p176, %p177
    %p179 = scmp.ne.s32.totalorder %s171, %s173
    %p180 = scmp.eq.s32.totalorder %s32, 1
    %p181 = por %p179, %p180
    %p182 = scmp.ne.s32.totalorder %s173, %s174
    %p183 = scmp.eq.s32.totalorder %s32, 0
    %p184 = por %p182, %p183
    %p185 = scmp.ne.s32.totalorder %s173, %s174
    %p186 = scmp.eq.s32.totalorder %s33, 1
    %p187 = por %p185, %p186
    %p189 = scmp.ne.s32.totalorder %s174, %s188
    %p190 = scmp.eq.s32.totalorder %s33, 0
    %p191 = por %p189, %p190
    %s193 = sadd.s32 %s192, 1
    %p196 = scmp.eq.s32.totalorder %s27, 1
    %p197 = scmp.ne.s32.totalorder %s192, %s194
    %p198 = scmp.eq.s32.totalorder %s27, 0
    %p199 = por %p197, %p198
    %p200 = scmp.ne.s32.totalorder %s192, %s194
    %p201 = scmp.eq.s32.totalorder %s32, 1
    %p202 = por %p200, %p201
    %p203 = scmp.ne.s32.totalorder %s194, %s195
    %p204 = scmp.eq.s32.totalorder %s32, 0
    %p205 = por %p203, %p204
    %p206 = scmp.ne.s32.totalorder %s194, %s195
    %p207 = scmp.eq.s32.totalorder %s33, 1
    %p208 = por %p206, %p207
    %p210 = scmp.ne.s32.totalorder %s195, %s209
    %p211 = scmp.eq.s32.totalorder %s33, 0
    %p212 = por %p210, %p211
    %s214 = sadd.s32 %s213, 1
    %p217 = scmp.eq.s32.totalorder %s27, 1
    %p218 = scmp.ne.s32.totalorder %s213, %s215
    %p219 = scmp.eq.s32.totalorder %s27, 0
    %p220 = por %p218, %p219
    %p221 = scmp.ne.s32.totalorder %s213, %s215
    %p222 = scmp.eq.s32.totalorder %s32, 1
    %p223 = por %p221, %p222
    %p224 = scmp.ne.s32.totalorder %s215, %s216
    %p225 = scmp.eq.s32.totalorder %s32, 0
    %p226 = por %p224, %p225
    %p227 = scmp.ne.s32.totalorder %s215, %s216
    %p228 = scmp.eq.s32.totalorder %s33, 1
    %p229 = por %p227, %p228
    %p231 = scmp.ne.s32.totalorder %s216, %s230
    %p232 = scmp.eq.s32.totalorder %s33, 0
    %p233 = por %p231, %p232
    %s235 = sadd.s32 %s234, 1
    %p238 = scmp.eq.s32.totalorder %s27, 1
    %p239 = scmp.ne.s32.totalorder %s234, %s236
    %p240 = scmp.eq.s32.totalorder %s27, 0
    %p241 = por %p239, %p240
    %p242 = scmp.ne.s32.totalorder %s234, %s236
    %p243 = scmp.eq.s32.totalorder %s32, 1
    %p244 = por %p242, %p243
    %p245 = scmp.ne.s32.totalorder %s236, %s237
    %p246 = scmp.eq.s32.totalorder %s32, 0
    %p247 = por %p245, %p246
    %p248 = scmp.ne.s32.totalorder %s236, %s237
    %p249 = scmp.eq.s32.totalorder %s33, 1
    %p250 = por %p248, %p249
    %p252 = scmp.ne.s32.totalorder %s237, %s251
    %p253 = scmp.eq.s32.totalorder %s33, 0
    %p254 = por %p252, %p253
    %s256 = sadd.s32 %s255, 1
    %p259 = scmp.eq.s32.totalorder %s27, 1
    %p260 = scmp.ne.s32.totalorder %s255, %s257
    %p261 = scmp.eq.s32.totalorder %s27, 0
    %p262 = por %p260, %p261
    %p263 = scmp.ne.s32.totalorder %s255, %s257
    %p264 = scmp.eq.s32.totalorder %s32, 1
    %p265 = por %p263, %p264
    %p266 = scmp.ne.s32.totalorder %s257, %s258
    %p267 = scmp.eq.s32.totalorder %s32, 0
    %p268 = por %p266, %p267
    %p269 = scmp.ne.s32.totalorder %s257, %s258
    %p270 = scmp.eq.s32.totalorder %s33, 1
    %p271 = por %p269, %p270
    %p273 = scmp.ne.s32.totalorder %s258, %s272
    %p274 = scmp.eq.s32.totalorder %s33, 0
    %p275 = por %p273, %p274
    %s277 = sadd.s32 %s276, 1
    %p280 = scmp.eq.s32.totalorder %s27, 1
    %p281 = scmp.ne.s32.totalorder %s276, %s278
    %p282 = scmp.eq.s32.totalorder %s27, 0
    %p283 = por %p281, %p282
    %p284 = scmp.ne.s32.totalorder %s276, %s278
    %p285 = scmp.eq.s32.totalorder %s32, 1
    %p286 = por %p284, %p285
    %p287 = scmp.ne.s32.totalorder %s278, %s279
    %p288 = scmp.eq.s32.totalorder %s32, 0
    %p289 = por %p287, %p288
    %p290 = scmp.ne.s32.totalorder %s278, %s279
    %p291 = scmp.eq.s32.totalorder %s33, 1
    %p292 = por %p290, %p291
    %p294 = scmp.ne.s32.totalorder %s279, %s293
    %p295 = scmp.eq.s32.totalorder %s33, 0
    %p296 = por %p294, %p295
    %s298 = sadd.s32 %s297, 1
    %p301 = scmp.eq.s32.totalorder %s27, 1
    %p302 = scmp.ne.s32.totalorder %s297, %s299
    %p303 = scmp.eq.s32.totalorder %s27, 0
    %p304 = por %p302, %p303
    %p305 = scmp.ne.s32.totalorder %s297, %s299
    %p306 = scmp.eq.s32.totalorder %s32, 1
    %p307 = por %p305, %p306
    %p308 = scmp.ne.s32.totalorder %s299, %s300
    %p309 = scmp.eq.s32.totalorder %s32, 0
    %p310 = por %p308, %p309
    %p311 = scmp.ne.s32.totalorder %s299, %s300
    %p312 = scmp.eq.s32.totalorder %s33, 1
    %p313 = por %p311, %p312
    %p315 = scmp.ne.s32.totalorder %s300, %s314
    %p316 = scmp.eq.s32.totalorder %s33, 0
    %p317 = por %p315, %p316
    %s319 = sadd.s32 %s318, 1
    %p322 = scmp.eq.s32.totalorder %s27, 1
    %p323 = scmp.ne.s32.totalorder %s318, %s320
    %p324 = scmp.eq.s32.totalorder %s27, 0
    %p325 = por %p323, %p324
    %p326 = scmp.ne.s32.totalorder %s318, %s320
    %p327 = scmp.eq.s32.totalorder %s32, 1
    %p328 = por %p326, %p327
    %p329 = scmp.ne.s32.totalorder %s320, %s321
    %p330 = scmp.eq.s32.totalorder %s32, 0
    %p331 = por %p329, %p330
    %p332 = scmp.ne.s32.totalorder %s320, %s321
    %p333 = scmp.eq.s32.totalorder %s33, 1
    %p334 = por %p332, %p333
    %p336 = scmp.ne.s32.totalorder %s321, %s335
    %p337 = scmp.eq.s32.totalorder %s33, 0
    %p338 = por %p336, %p337
    %s340 = sadd.s32 %s339, 1
    %p343 = scmp.eq.s32.totalorder %s27, 1
    %p344 = scmp.ne.s32.totalorder %s339, %s341
    %p345 = scmp.eq.s32.totalorder %s27, 0
    %p346 = por %p344, %p345
    %p347 = scmp.ne.s32.totalorder %s339, %s341
    %p348 = scmp.eq.s32.totalorder %s32, 1
    %p349 = por %p347, %p348
    %p350 = scmp.ne.s32.totalorder %s341, %s342
    %p351 = scmp.eq.s32.totalorder %s32, 0
    %p352 = por %p350, %p351
    %p353 = scmp.ne.s32.totalorder %s341, %s342
    %p354 = scmp.eq.s32.totalorder %s33, 1
    %p355 = por %p353, %p354
    %p357 = scmp.ne.s32.totalorder %s342, %s356
    %p358 = scmp.eq.s32.totalorder %s33, 0
    %p359 = por %p357, %p358
    %s361 = sadd.s32 %s360, 1
    %p364 = scmp.eq.s32.totalorder %s27, 1
    %p365 = scmp.ne.s32.totalorder %s360, %s362
    %p366 = scmp.eq.s32.totalorder %s27, 0
    %p367 = por %p365, %p366
    %p368 = scmp.ne.s32.totalorder %s360, %s362
    %p369 = scmp.eq.s32.totalorder %s32, 1
    %p370 = por %p368, %p369
    %p371 = scmp.ne.s32.totalorder %s362, %s363
    %p372 = scmp.eq.s32.totalorder %s32, 0
    %p373 = por %p371, %p372
    %p374 = scmp.ne.s32.totalorder %s362, %s363
    %p375 = scmp.eq.s32.totalorder %s33, 1
    %p376 = por %p374, %p375
    %p378 = scmp.ne.s32.totalorder %s363, %s377
    %p379 = scmp.eq.s32.totalorder %s33, 0
    %p380 = por %p378, %p379
    %s382 = sadd.s32 %s381, 1
    %p385 = scmp.eq.s32.totalorder %s27, 1
    %p386 = scmp.ne.s32.totalorder %s381, %s383
    %p387 = scmp.eq.s32.totalorder %s27, 0
    %p388 = por %p386, %p387
    %p389 = scmp.ne.s32.totalorder %s381, %s383
    %p390 = scmp.eq.s32.totalorder %s32, 1
    %p391 = por %p389, %p390
    %p392 = scmp.ne.s32.totalorder %s383, %s384
    %p393 = scmp.eq.s32.totalorder %s32, 0
    %p394 = por %p392, %p393
    %p395 = scmp.ne.s32.totalorder %s383, %s384
    %p396 = scmp.eq.s32.totalorder %s33, 1
    %p397 = por %p395, %p396
    %p399 = scmp.ne.s32.totalorder %s384, %s398
    %p400 = scmp.eq.s32.totalorder %s33, 0
    %p401 = por %p399, %p400
    %s403 = sadd.s32 %s402, 1
    %p406 = scmp.eq.s32.totalorder %s27, 1
    %p407 = scmp.ne.s32.totalorder %s402, %s404
    %p408 = scmp.eq.s32.totalorder %s27, 0
    %p409 = por %p407, %p408
    %p410 = scmp.ne.s32.totalorder %s402, %s404
    %p411 = scmp.eq.s32.totalorder %s32, 1
    %p412 = por %p410, %p411
    %p413 = scmp.ne.s32.totalorder %s404, %s405
    %p414 = scmp.eq.s32.totalorder %s32, 0
    %p415 = por %p413, %p414
    %p416 = scmp.ne.s32.totalorder %s404, %s405
    %p417 = scmp.eq.s32.totalorder %s33, 1
    %p418 = por %p416, %p417
    %p420 = scmp.ne.s32.totalorder %s405, %s419
    %p421 = scmp.eq.s32.totalorder %s33, 0
    %p422 = por %p420, %p421
    %s424 = sadd.s32 %s423, 1
    %p427 = scmp.eq.s32.totalorder %s27, 1
    %p428 = scmp.ne.s32.totalorder %s423, %s425
    %p429 = scmp.eq.s32.totalorder %s27, 0
    %p430 = por %p428, %p429
    %p431 = scmp.ne.s32.totalorder %s423, %s425
    %p432 = scmp.eq.s32.totalorder %s32, 1
    %p433 = por %p431, %p432
    %p434 = scmp.ne.s32.totalorder %s425, %s426
    %p435 = scmp.eq.s32.totalorder %s32, 0
    %p436 = por %p434, %p435
    %p437 = scmp.ne.s32.totalorder %s425, %s426
    %p438 = scmp.eq.s32.totalorder %s33, 1
    %p439 = por %p437, %p438
    %p441 = scmp.ne.s32.totalorder %s426, %s440
    %p442 = scmp.eq.s32.totalorder %s33, 0
    %p443 = por %p441, %p442
    %s445 = sadd.s32 %s444, 1
    %p448 = scmp.eq.s32.totalorder %s27, 1
    %p449 = scmp.ne.s32.totalorder %s444, %s446
    %p450 = scmp.eq.s32.totalorder %s27, 0
    %p451 = por %p449, %p450
    %p452 = scmp.ne.s32.totalorder %s444, %s446
    %p453 = scmp.eq.s32.totalorder %s32, 1
    %p454 = por %p452, %p453
    %p455 = scmp.ne.s32.totalorder %s446, %s447
    %p456 = scmp.eq.s32.totalorder %s32, 0
    %p457 = por %p455, %p456
    %p458 = scmp.ne.s32.totalorder %s446, %s447
    %p459 = scmp.eq.s32.totalorder %s33, 1
    %p460 = por %p458, %p459
    %p462 = scmp.ne.s32.totalorder %s447, %s461
    %p463 = scmp.eq.s32.totalorder %s33, 0
    %p464 = por %p462, %p463
    %s466 = sadd.s32 %s465, 1
    %p469 = scmp.eq.s32.totalorder %s27, 1
    %p470 = scmp.ne.s32.totalorder %s465, %s467
    %p471 = scmp.eq.s32.totalorder %s27, 0
    %p472 = por %p470, %p471
    %p473 = scmp.ne.s32.totalorder %s465, %s467
    %p474 = scmp.eq.s32.totalorder %s32, 1
    %p475 = por %p473, %p474
    %p476 = scmp.ne.s32.totalorder %s467, %s468
    %p477 = scmp.eq.s32.totalorder %s32, 0
    %p478 = por %p476, %p477
    %p479 = scmp.ne.s32.totalorder %s467, %s468
    %p480 = scmp.eq.s32.totalorder %s33, 1
    %p481 = por %p479, %p480
    %p483 = scmp.ne.s32.totalorder %s468, %s482
    %p484 = scmp.eq.s32.totalorder %s33, 0
    %p485 = por %p483, %p484
    %s486 = ssub.s32 %s27, %s34
    %p487 = scmp.eq.s32.totalorder %s486, 0
    %s489 = sadd.s32 %s488, 1
    %s490 = scalar_select %p487, %s488, %s489
    %p493 = pneg %p487
    %p494 = scmp.eq.s32.totalorder %s27, 1
    %p495 = por %p493, %p494
    %p496 = scmp.ne.s32.totalorder %s488, %s491
    %p497 = scmp.eq.s32.totalorder %s27, 0
    %p498 = por %p496, %p497
    %p499 = scmp.ne.s32.totalorder %s488, %s491
    %p500 = scmp.eq.s32.totalorder %s32, 1
    %p501 = por %p499, %p500
    %p502 = scmp.ne.s32.totalorder %s491, %s492
    %p503 = scmp.eq.s32.totalorder %s32, 0
    %p504 = por %p502, %p503
    %p505 = scmp.ne.s32.totalorder %s491, %s492
    %p506 = scmp.eq.s32.totalorder %s33, 1
    %p507 = por %p505, %p506
    %p509 = scmp.ne.s32.totalorder %s492, %s508
    %p510 = scmp.eq.s32.totalorder %s33, 0
    %p511 = por %p509, %p510
    %p512 = scmp.le.s32.totalorder 1, %s27
    %p513 = scmp.lt.s32.totalorder %s27, 3
    %p514 = pnand %p512, %p513
    %p515 = pneg %p514
    // Predicated region
    $region9: #{nap_forward.1} parent=5 // pred_check
      _
    $region10: #{nap_forward.1} parent=5 // pred_check_branch
      %517 = sbr.rel (%p514) target = $region12
    $region11: #{nap_forward.1} parent=5 // pred_region
      %s518 = ssub.s32 %s27, 1
      // Predicated region
      $region13: #{nap_forward.1} parent=11 // pred_check
        %p519 = pneg %p100
      $region14: #{nap_forward.1} parent=11 // pred_check_branch
        %521 = sbr.rel (%p519) target = $region16
      $region15: #{nap_forward.1} parent=11 // pred_region
        _
      $region16: #{nap_forward.1} parent=11 // pred_fallthru
        _
      // Predicated region
      $region17: #{nap_forward.1} parent=11 // pred_check
        %p522 = pneg %p121
      $region18: #{nap_forward.1} parent=11 // pred_check_branch
        %524 = sbr.rel (%p522) target = $region20
      $region19: #{nap_forward.1} parent=11 // pred_region
        _
      $region20: #{nap_forward.1} parent=11 // pred_fallthru
        _
      // Predicated region
      $region21: #{nap_forward.1} parent=11 // pred_check
        %p525 = pneg %p142
      $region22: #{nap_forward.1} parent=11 // pred_check_branch
        %527 = sbr.rel (%p525) target = $region24
      $region23: #{nap_forward.1} parent=11 // pred_region
        _
      $region24: #{nap_forward.1} parent=11 // pred_fallthru
        _
      // Predicated region
      $region25: #{nap_forward.1} parent=11 // pred_check
        %p528 = pneg %p163
      $region26: #{nap_forward.1} parent=11 // pred_check_branch
        %530 = sbr.rel (%p528) target = $region28
      $region27: #{nap_forward.1} parent=11 // pred_region
        _
      $region28: #{nap_forward.1} parent=11 // pred_fallthru
        _
      // Predicated region
      $region29: #{nap_forward.1} parent=11 // pred_check
        %p531 = pneg %p184
      $region30: #{nap_forward.1} parent=11 // pred_check_branch
        %533 = sbr.rel (%p531) target = $region32
      $region31: #{nap_forward.1} parent=11 // pred_region
        _
      $region32: #{nap_forward.1} parent=11 // pred_fallthru
        _
      // Predicated region
      $region33: #{nap_forward.1} parent=11 // pred_check
        %p534 = pneg %p205
      $region34: #{nap_forward.1} parent=11 // pred_check_branch
        %536 = sbr.rel (%p534) target = $region36
      $region35: #{nap_forward.1} parent=11 // pred_region
        _
      $region36: #{nap_forward.1} parent=11 // pred_fallthru
        _
      // Predicated region
      $region37: #{nap_forward.1} parent=11 // pred_check
        %p537 = pneg %p226
      $region38: #{nap_forward.1} parent=11 // pred_check_branch
        %539 = sbr.rel (%p537) target = $region40
      $region39: #{nap_forward.1} parent=11 // pred_region
        _
      $region40: #{nap_forward.1} parent=11 // pred_fallthru
        _
      // Predicated region
      $region41: #{nap_forward.1} parent=11 // pred_check
        %p540 = pneg %p247
      $region42: #{nap_forward.1} parent=11 // pred_check_branch
        %542 = sbr.rel (%p540) target = $region44
      $region43: #{nap_forward.1} parent=11 // pred_region
        _
      $region44: #{nap_forward.1} parent=11 // pred_fallthru
        _
      // Predicated region
      $region45: #{nap_forward.1} parent=11 // pred_check
        %p543 = pneg %p268
      $region46: #{nap_forward.1} parent=11 // pred_check_branch
        %545 = sbr.rel (%p543) target = $region48
      $region47: #{nap_forward.1} parent=11 // pred_region
        _
      $region48: #{nap_forward.1} parent=11 // pred_fallthru
        _
      // Predicated region
      $region49: #{nap_forward.1} parent=11 // pred_check
        %p546 = pneg %p289
      $region50: #{nap_forward.1} parent=11 // pred_check_branch
        %548 = sbr.rel (%p546) target = $region52
      $region51: #{nap_forward.1} parent=11 // pred_region
        _
      $region52: #{nap_forward.1} parent=11 // pred_fallthru
        _
      // Predicated region
      $region53: #{nap_forward.1} parent=11 // pred_check
        %p549 = pneg %p310
      $region54: #{nap_forward.1} parent=11 // pred_check_branch
        %551 = sbr.rel (%p549) target = $region56
      $region55: #{nap_forward.1} parent=11 // pred_region
        _
      $region56: #{nap_forward.1} parent=11 // pred_fallthru
        _
      // Predicated region
      $region57: #{nap_forward.1} parent=11 // pred_check
        %p552 = pneg %p331
      $region58: #{nap_forward.1} parent=11 // pred_check_branch
        %554 = sbr.rel (%p552) target = $region60
      $region59: #{nap_forward.1} parent=11 // pred_region
        _
      $region60: #{nap_forward.1} parent=11 // pred_fallthru
        _
      // Predicated region
      $region61: #{nap_forward.1} parent=11 // pred_check
        %p555 = pneg %p352
      $region62: #{nap_forward.1} parent=11 // pred_check_branch
        %557 = sbr.rel (%p555) target = $region64
      $region63: #{nap_forward.1} parent=11 // pred_region
        _
      $region64: #{nap_forward.1} parent=11 // pred_fallthru
        _
      // Predicated region
      $region65: #{nap_forward.1} parent=11 // pred_check
        %p558 = pneg %p373
      $region66: #{nap_forward.1} parent=11 // pred_check_branch
        %560 = sbr.rel (%p558) target = $region68
      $region67: #{nap_forward.1} parent=11 // pred_region
        _
      $region68: #{nap_forward.1} parent=11 // pred_fallthru
        _
      // Predicated region
      $region69: #{nap_forward.1} parent=11 // pred_check
        %p561 = pneg %p394
      $region70: #{nap_forward.1} parent=11 // pred_check_branch
        %563 = sbr.rel (%p561) target = $region72
      $region71: #{nap_forward.1} parent=11 // pred_region
        _
      $region72: #{nap_forward.1} parent=11 // pred_fallthru
        _
      // Predicated region
      $region73: #{nap_forward.1} parent=11 // pred_check
        %p564 = pneg %p415
      $region74: #{nap_forward.1} parent=11 // pred_check_branch
        %566 = sbr.rel (%p564) target = $region76
      $region75: #{nap_forward.1} parent=11 // pred_region
        _
      $region76: #{nap_forward.1} parent=11 // pred_fallthru
        _
      // Predicated region
      $region77: #{nap_forward.1} parent=11 // pred_check
        %p567 = pneg %p436
      $region78: #{nap_forward.1} parent=11 // pred_check_branch
        %569 = sbr.rel (%p567) target = $region80
      $region79: #{nap_forward.1} parent=11 // pred_region
        _
      $region80: #{nap_forward.1} parent=11 // pred_fallthru
        _
      // Predicated region
      $region81: #{nap_forward.1} parent=11 // pred_check
        %p570 = pneg %p457
      $region82: #{nap_forward.1} parent=11 // pred_check_branch
        %572 = sbr.rel (%p570) target = $region84
      $region83: #{nap_forward.1} parent=11 // pred_region
        _
      $region84: #{nap_forward.1} parent=11 // pred_fallthru
        _
      // Predicated region
      $region85: #{nap_forward.1} parent=11 // pred_check
        %p573 = pneg %p478
      $region86: #{nap_forward.1} parent=11 // pred_check_branch
        %575 = sbr.rel (%p573) target = $region88
      $region87: #{nap_forward.1} parent=11 // pred_region
        _
      $region88: #{nap_forward.1} parent=11 // pred_fallthru
        _
    $region12: #{nap_forward.1} parent=5 // pred_fallthru
      _
    %p576 = scmp.lt.s32.totalorder %s27, 2
    // Predicated region
    $region89: #{nap_forward.1} parent=5 // pred_check
      %p577 = pneg %p576
    $region90: #{nap_forward.1} parent=5 // pred_check_branch
      %579 = sbr.rel (%p577) target = $region92
    $region91: #{nap_forward.1} parent=5 // pred_region
      // Predicated region
      $region93: #{nap_forward.1} parent=91 // pred_check
        %p580 = pneg %p47
      $region94: #{nap_forward.1} parent=91 // pred_check_branch
        %582 = sbr.rel (%p580) target = $region96
      $region95: #{nap_forward.1} parent=91 // pred_region
        %p583 = scmp.lt.s32.totalorder %s27, 1
        %s584 = scalar_select %p583, %s27, 1
        %s585 = smul.addr %s584, 8
        %s586 = scalar_lea.vmem %s0, %s585
      $region96: #{nap_forward.1} parent=91 // pred_fallthru
        _
      // Predicated region
      $region97: #{nap_forward.1} parent=91 // pred_check
        %p587 = pneg %p73
      $region98: #{nap_forward.1} parent=91 // pred_check_branch
        %589 = sbr.rel (%p587) target = $region100
      $region99: #{nap_forward.1} parent=91 // pred_region
        %p590 = scmp.lt.s32.totalorder %s27, 1
        %s591 = scalar_select %p590, %s27, 1
        %s592 = smul.addr %s591, 8
        %s593 = scalar_lea.vmem %s1, %s592
      $region100: #{nap_forward.1} parent=91 // pred_fallthru
        _
    $region92: #{nap_forward.1} parent=5 // pred_fallthru
      _
    %p594 = scmp.le.s32.totalorder 1, %s27
    %p595 = scmp.lt.s32.totalorder %s27, 3
    %p596 = pnand %p594, %p595
    %p597 = pneg %p596
    // Predicated region
    $region101: #{nap_forward.1} parent=5 // pred_check
      _
    $region102: #{nap_forward.1} parent=5 // pred_check_branch
      %599 = sbr.rel (%p596) target = $region104
    $region103: #{nap_forward.1} parent=5 // pred_region
      %s600 = ssub.s32 %s27, 1
      %p601 = scmp.lt.s32.totalorder %s32, 1
      %s602 = scalar_select %p601, %s32, 1
      %s603 = smul.addr %s602, 8
      %s604 = scalar_lea.vmem %s0, %s603
      %p605 = pneg %p53
      %p606 = pneg %p50
      %p607 = scmp.lt.s32.totalorder %s32, 1
      %s608 = scalar_select %p607, %s32, 1
      %s609 = smul.addr %s608, 8
      %s610 = scalar_lea.vmem %s1, %s609
      %p611 = pneg %p79
      %p612 = pneg %p76
      %p613 = pneg %p100
      %p614 = pneg %p97
      %p615 = pneg %p121
      %p616 = pneg %p118
      %p617 = pneg %p142
      %p618 = pneg %p139
      %p619 = pneg %p163
      %p620 = pneg %p160
      %p621 = pneg %p184
      %p622 = pneg %p181
      %p623 = pneg %p205
      %p624 = pneg %p202
      %p625 = pneg %p226
      %p626 = pneg %p223
      %p627 = pneg %p247
      %p628 = pneg %p244
      %p629 = pneg %p268
      %p630 = pneg %p265
      %p631 = pneg %p289
      %p632 = pneg %p286
      %p633 = pneg %p310
      %p634 = pneg %p307
      %p635 = pneg %p331
      %p636 = pneg %p328
      %p637 = pneg %p352
      %p638 = pneg %p349
      %p639 = pneg %p373
      %p640 = pneg %p370
      %p641 = pneg %p394
      %p642 = pneg %p391
      %p643 = pneg %p415
      %p644 = pneg %p412
      %p645 = pneg %p436
      %p646 = pneg %p433
      %p647 = pneg %p457
      %p648 = pneg %p454
      %p649 = pneg %p478
      %p650 = pneg %p475
      %p651 = pneg %p504
      %p652 = pneg %p501
      %p653 = scmp.lt.s32.totalorder %s32, 1
      %s654 = scalar_select %p653, %s32, 1
      %s655 = smul.addr %s654, 4
      %s656 = scalar_lea.vmem %s21, %s655
      %p657 = scmp.lt.s32.totalorder %s32, 1
      %s658 = scalar_select %p657, %s32, 1
      %s659 = smul.addr %s658, 8
      %s660 = scalar_lea.vmem %s0, %s659
      %p661 = scmp.lt.s32.totalorder %s32, 1
      %s662 = scalar_select %p661, %s32, 1
      %s663 = smul.addr %s662, 8
      %s664 = scalar_lea.vmem %s1, %s663
      %p665 = scmp.lt.s32.totalorder %s32, 1
      %s666 = scalar_select %p665, %s32, 1
      %s667 = smul.addr %s666, 4
      %s668 = scalar_lea.vmem %s21, %s667
      %v670 = vld [vmem:[%s660] sm:$0xff]
      %v671 = vld [vmem:[%s664] sm:$0xff]
      %v672 = vpack.c.bf16 %v670, %v670
      %v673 = vld [vmem:[%s3] sm:$0x3]
      %v674 = vld [vmem:[%s4] sm:$0x1]
      %v676 = vlaneseq
      %v677 = vshrl.u32 %v676, 7
      %v678 = vsub.s32 0, %v677
      %v679 = vrot.slane %v674, %v678
      %vm681 = vcmask 31744
      %v683 = vsel %vm681, %v672, 0
      %vm685 = vcmask 1041408
      %v687 = vsel %vm685, %v673, 0
      %689 = vmatprep.subr.bf16.mxu0 0
      %690 = vmatpush1.bf16.msra.mxu0 %v687
      %691 = vmatprep.subr.bf16.mxu0 0
      %692 = vmatpush1.bf16.msra.mxu0 0
      %693 = vmatprep.subr.bf16.mxu0 0
      %694 = vmatpush1.bf16.msra.mxu0 0
      %695 = vmatprep.subr.bf16.mxu0 0
      %696 = vmatpush1.bf16.msra.mxu0 0
      %697 = vmatprep.subr.bf16.mxu0 0
      %698 = vmatpush1.bf16.msra.mxu0 0
      %699 = vmatprep.subr.bf16.mxu0 0
      %700 = vmatpush1.bf16.msra.mxu0 0
      %701 = vmatprep.subr.bf16.mxu0 0
      %702 = vmatpush1.bf16.msra.mxu0 0
      %703 = vmatprep.subr.bf16.mxu0 0
      %704 = vmatpush1.bf16.msra.mxu0 0
      %705 = vmatprep.subr.bf16.mxu0 0
      %706 = vmatpush1.bf16.msra.mxu0 0
      %707 = vmatprep.subr.bf16.mxu0 0
      %708 = vmatpush1.bf16.msra.mxu0 0
      %709 = vmatprep.subr.bf16.mxu0 0
      %710 = vmatpush1.bf16.msra.mxu0 0
      %711 = vmatprep.subr.bf16.mxu0 0
      %712 = vmatpush1.bf16.msra.mxu0 0
      %713 = vmatprep.subr.bf16.mxu0 0
      %714 = vmatpush1.bf16.msra.mxu0 0
      %715 = vmatprep.subr.bf16.mxu0 0
      %716 = vmatpush1.bf16.msra.mxu0 0
      %717 = vmatprep.subr.bf16.mxu0 0
      %718 = vmatpush1.bf16.msra.mxu0 0
      %719 = vmatprep.subr.bf16.mxu0 0
      %720 = vmatpush1.bf16.msra.mxu0 0
      %721 = vmatprep.mubr.bf16.mxu0 0
      %722 = vmatmul.mubr.bf16.gmra.mrb[0].mxu0 %v683
      %v723 = vpop.f32.mrb[0].mxu0
      %v724 = vadd.f32 %v679, %v723
      %v725 = vpop.f32.mrb[0].mxu0
      %v726 = vpop.f32.mrb[0].mxu0
      %v727 = vpop.f32.mrb[0].mxu0
      %728 = vdwg.mxu0
      %v729 = vld [vmem:[%s5] sm:$0x1]
      %731 = vset.pattern.permute.xlu0 0
      %732 = vperm.xlu0 %731, %v671
      %v733 = vpop.permute.xlu0 %732
      %v736 = vlaneseq
      %v737 = vshrl.u32 %v736, 7
      %v738 = vsub.s32 0, %v737
      %v739 = vrot.slane %v729, %v738
      %v741 = vmul.f32 %v733, %v739
      %v742 = vld [vmem:[%s6] sm:$0x1]
      %v744 = vlaneseq
      %v745 = vshrl.u32 %v744, 7
      %v746 = vsub.s32 0, %v745
      %v747 = vrot.slane %v742, %v746
      %v749 = vadd.f32 %v741, %v747
      %v750 = vlaneseq
      %v751 = vshrl.u32 %v750, 7
      %vm752 = vcmp.lt.s32.totalorder %v751, 4
      %v753 = vsel %vm752, 1, 0
      %vm754 = vcmp.eq.s32.totalorder %v753, 1
      %v755 = vsel %vm754, %v749, 0.0
      %v756 = vadd.f32 %v724, %v755
      %v757 = vld [vmem:[%s2] sm:$0xff]
      %v758 = vld [vmem:[%s7] sm:$0xf]
      %v759 = vld [vmem:[%s7 + $0x4] sm:$0xf]
      %v760 = vld [vmem:[%s7 + $0x8] sm:$0xf]
      %v761 = vld [vmem:[%s7 + $0xc] sm:$0xf]
      %v762 = vld [vmem:[%s9] sm:$0xf]
      %v763 = vld [vmem:[%s9 + $0x4] sm:$0xf]
      %v764 = vld [vmem:[%s9 + $0x8] sm:$0xf]
      %v765 = vld [vmem:[%s9 + $0xc] sm:$0xf]
      %v766 = vpack.c.bf16 %v756, %v756
      %v767 = vld [vmem:[%s8] sm:$0x1]
      %v769 = vlaneseq
      %v770 = vshrl.u32 %v769, 7
      %v771 = vsub.s32 0, %v770
      %v772 = vrot.slane %v767, %v771
      %v778 = vunpack.c.l.b16 %v758
      %v779 = vunpack.c.l.b16 %v759
      %v780 = vunpack.c.l.b16 %v760
      %v781 = vunpack.c.l.b16 %v761
      %v782 = vpack.c.b16 %v779, %v778
      %v783 = vpack.c.b16 %v781, %v780
      %vm786 = vcmask 261120
      %v788 = vsel %vm786, %v766, 0
      %790 = vmatprep.subr.bf16.mxu0 0
      %791 = vmatpush1.bf16.msra.mxu0 %v782
      %792 = vmatprep.subr.bf16.mxu0 0
      %793 = vmatpush1.bf16.msra.mxu0 %v783
      %794 = vmatprep.subr.bf16.mxu0 0
      %795 = vmatpush1.bf16.msra.mxu0 0
      %796 = vmatprep.subr.bf16.mxu0 0
      %797 = vmatpush1.bf16.msra.mxu0 0
      %798 = vmatprep.subr.bf16.mxu0 0
      %799 = vmatpush1.bf16.msra.mxu0 0
      %800 = vmatprep.subr.bf16.mxu0 0
      %801 = vmatpush1.bf16.msra.mxu0 0
      %802 = vmatprep.subr.bf16.mxu0 0
      %803 = vmatpush1.bf16.msra.mxu0 0
      %804 = vmatprep.subr.bf16.mxu0 0
      %805 = vmatpush1.bf16.msra.mxu0 0
      %806 = vmatprep.subr.bf16.mxu0 0
      %807 = vmatpush1.bf16.msra.mxu0 0
      %808 = vmatprep.subr.bf16.mxu0 0
      %809 = vmatpush1.bf16.msra.mxu0 0
      %810 = vmatprep.subr.bf16.mxu0 0
      %811 = vmatpush1.bf16.msra.mxu0 0
      %812 = vmatprep.subr.bf16.mxu0 0
      %813 = vmatpush1.bf16.msra.mxu0 0
      %814 = vmatprep.subr.bf16.mxu0 0
      %815 = vmatpush1.bf16.msra.mxu0 0
      %816 = vmatprep.subr.bf16.mxu0 0
      %817 = vmatpush1.bf16.msra.mxu0 0
      %818 = vmatprep.subr.bf16.mxu0 0
      %819 = vmatpush1.bf16.msra.mxu0 0
      %820 = vmatprep.subr.bf16.mxu0 0
      %821 = vmatpush1.bf16.msra.mxu0 0
      %822 = vmatprep.mubr.bf16.mxu0 0
      %823 = vmatmul.mubr.bf16.gmra.mrb[0].mxu0 %v788
      %v824 = vpop.f32.mrb[0].mxu0
      %v825 = vadd.f32 %v772, %v824
      %v826 = vpop.f32.mrb[0].mxu0
      %v827 = vpop.f32.mrb[0].mxu0
      %v828 = vpop.f32.mrb[0].mxu0
      %829 = vdwg.mxu0
      %v830 = vpack.c.bf16 %v825, %v825
      %832 = vrot.lane.b32.xlu0 %v830, 96
      %v833 = vpop.permute.xlu0 %832
      %vm834 = vcmask 130048
      %v836 = vsel %vm834, %v830, 0
      %v839 = vsel %vm834, %v833, 0
      %841 = vmatprep.subr.bf16.mxu0 0
      %842 = vmatpush1.bf16.xpose.msra.mxu0 %v839
      %843 = vmatprep.subr.bf16.mxu0 0
      %844 = vmatpush1.bf16.xpose.msra.mxu0 0
      %845 = vmatprep.subr.bf16.mxu0 0
      %846 = vmatpush1.bf16.xpose.msra.mxu0 0
      %847 = vmatprep.subr.bf16.mxu0 0
      %848 = vmatpush1.bf16.xpose.msra.mxu0 0
      %849 = vmatprep.subr.bf16.mxu0 0
      %850 = vmatpush1.bf16.xpose.msra.mxu0 0
      %851 = vmatprep.subr.bf16.mxu0 0
      %852 = vmatpush1.bf16.xpose.msra.mxu0 0
      %853 = vmatprep.subr.bf16.mxu0 0
      %854 = vmatpush1.bf16.xpose.msra.mxu0 0
      %855 = vmatprep.subr.bf16.mxu0 0
      %856 = vmatpush1.bf16.xpose.msra.mxu0 0
      %857 = vmatprep.subr.bf16.mxu0 0
      %858 = vmatpush1.bf16.xpose.msra.mxu0 0
      %859 = vmatprep.subr.bf16.mxu0 0
      %860 = vmatpush1.bf16.xpose.msra.mxu0 0
      %861 = vmatprep.subr.bf16.mxu0 0
      %862 = vmatpush1.bf16.xpose.msra.mxu0 0
      %863 = vmatprep.subr.bf16.mxu0 0
      %864 = vmatpush1.bf16.xpose.msra.mxu0 0
      %865 = vmatprep.subr.bf16.mxu0 0
      %866 = vmatpush1.bf16.xpose.msra.mxu0 0
      %867 = vmatprep.subr.bf16.mxu0 0
      %868 = vmatpush1.bf16.xpose.msra.mxu0 0
      %869 = vmatprep.subr.bf16.mxu0 0
      %870 = vmatpush1.bf16.xpose.msra.mxu0 0
      %871 = vmatprep.subr.bf16.mxu0 0
      %872 = vmatpush1.bf16.xpose.msra.mxu0 0
      %873 = vmatprep.mubr.bf16.mxu0 0
      %874 = vmatmul.mubr.bf16.gmra.mrb[0].mxu0 %v836
      %v875 = vpop.f32.mrb[0].mxu0
      %v876 = vadd.f32 0.0, %v875
      %v877 = vpop.f32.mrb[0].mxu0
      %v878 = vpop.f32.mrb[0].mxu0
      %v879 = vpop.f32.mrb[0].mxu0
      %880 = vdwg.mxu0
      %v881 = vmul.f32 %v876, 0.25
      %v882 = vadd.f32 %v881, %v757
      %vm883 = vcmask 64512
      %v884 = vsel %vm883, %v882, -inf
      %885 = vmax.xlane.f32.xlu0 %v884
      %v886 = vpop.xlane.xlu0 %885
      %v887 = vsub.f32 %v882, %v886
      %v888 = vmul.f32 %v887, 1.442695
      %v889 = vpow.pop %v888
      %v890 = vsel %vm883, %v889, 0.0
      %891 = vadd.xlane.f32.xlu0 %v890
      %v892 = vpop.xlane.xlu0 %891
      %v893 = vrcp.pop %v892
      %v894 = vmul.f32 %v889, %v893
      %v895 = vpack.c.bf16 %v894, %v894
      %896 = vrot.lane.b32.xlu0 %v830, 64
      %v897 = vpop.permute.xlu0 %896
      %v899 = vsel %vm883, %v895, 0
      %vm901 = vcmask 1043456
      %v903 = vsel %vm901, %v897, 0
      %905 = vmatprep.subr.bf16.mxu0 0
      %906 = vmatpush1.bf16.msra.mxu0 %v903
      %907 = vmatprep.subr.bf16.mxu0 0
      %908 = vmatpush1.bf16.msra.mxu0 0
      %909 = vmatprep.subr.bf16.mxu0 0
      %910 = vmatpush1.bf16.msra.mxu0 0
      %911 = vmatprep.subr.bf16.mxu0 0
      %912 = vmatpush1.bf16.msra.mxu0 0
      %913 = vmatprep.subr.bf16.mxu0 0
      %914 = vmatpush1.bf16.msra.mxu0 0
      %915 = vmatprep.subr.bf16.mxu0 0
      %916 = vmatpush1.bf16.msra.mxu0 0
      %917 = vmatprep.subr.bf16.mxu0 0
      %918 = vmatpush1.bf16.msra.mxu0 0
      %919 = vmatprep.subr.bf16.mxu0 0
      %920 = vmatpush1.bf16.msra.mxu0 0
      %921 = vmatprep.subr.bf16.mxu0 0
      %922 = vmatpush1.bf16.msra.mxu0 0
      %923 = vmatprep.subr.bf16.mxu0 0
      %924 = vmatpush1.bf16.msra.mxu0 0
      %925 = vmatprep.subr.bf16.mxu0 0
      %926 = vmatpush1.bf16.msra.mxu0 0
      %927 = vmatprep.subr.bf16.mxu0 0
      %928 = vmatpush1.bf16.msra.mxu0 0
      %929 = vmatprep.subr.bf16.mxu0 0
      %930 = vmatpush1.bf16.msra.mxu0 0
      %931 = vmatprep.subr.bf16.mxu0 0
      %932 = vmatpush1.bf16.msra.mxu0 0
      %933 = vmatprep.subr.bf16.mxu0 0
      %934 = vmatpush1.bf16.msra.mxu0 0
      %935 = vmatprep.subr.bf16.mxu0 0
      %936 = vmatpush1.bf16.msra.mxu0 0
      %937 = vmatprep.mubr.bf16.mxu0 0
      %938 = vmatmul.mubr.bf16.gmra.mrb[0].mxu0 %v899
      %v939 = vpop.f32.mrb[0].mxu0
      %v940 = vadd.f32 0.0, %v939
      %v941 = vpop.f32.mrb[0].mxu0
      %v942 = vpop.f32.mrb[0].mxu0
      %v943 = vpop.f32.mrb[0].mxu0
      %944 = vdwg.mxu0
      %945 = vrot.lane.b32.xlu0 %v830, 112
      %v946 = vpop.permute.xlu0 %945
      %947 = vrot.lane.b32.xlu0 %v830, 80
      %v948 = vpop.permute.xlu0 %947
      %v950 = vsel %vm834, %v946, 0
      %v953 = vsel %vm834, %v948, 0
      %955 = vmatprep.subr.bf16.mxu0 0
      %956 = vmatpush1.bf16.xpose.msra.mxu0 %v953
      %957 = vmatprep.subr.bf16.mxu0 0
      %958 = vmatpush1.bf16.xpose.msra.mxu0 0
      %959 = vmatprep.subr.bf16.mxu0 0
      %960 = vmatpush1.bf16.xpose.msra.mxu0 0
      %961 = vmatprep.subr.bf16.mxu0 0
      %962 = vmatpush1.bf16.xpose.msra.mxu0 0
      %963 = vmatprep.subr.bf16.mxu0 0
      %964 = vmatpush1.bf16.xpose.msra.mxu0 0
      %965 = vmatprep.subr.bf16.mxu0 0
      %966 = vmatpush1.bf16.xpose.msra.mxu0 0
      %967 = vmatprep.subr.bf16.mxu0 0
      %968 = vmatpush1.bf16.xpose.msra.mxu0 0
      %969 = vmatprep.subr.bf16.mxu0 0
      %970 = vmatpush1.bf16.xpose.msra.mxu0 0
      %971 = vmatprep.subr.bf16.mxu0 0
      %972 = vmatpush1.bf16.xpose.msra.mxu0 0
      %973 = vmatprep.subr.bf16.mxu0 0
      %974 = vmatpush1.bf16.xpose.msra.mxu0 0
      %975 = vmatprep.subr.bf16.mxu0 0
      %976 = vmatpush1.bf16.xpose.msra.mxu0 0
      %977 = vmatprep.subr.bf16.mxu0 0
      %978 = vmatpush1.bf16.xpose.msra.mxu0 0
      %979 = vmatprep.subr.bf16.mxu0 0
      %980 = vmatpush1.bf16.xpose.msra.mxu0 0
      %981 = vmatprep.subr.bf16.mxu0 0
      %982 = vmatpush1.bf16.xpose.msra.mxu0 0
      %983 = vmatprep.subr.bf16.mxu0 0
      %984 = vmatpush1.bf16.xpose.msra.mxu0 0
      %985 = vmatprep.subr.bf16.mxu0 0
      %986 = vmatpush1.bf16.xpose.msra.mxu0 0
      %987 = vmatprep.mubr.bf16.mxu0 0
      %988 = vmatmul.mubr.bf16.gmra.mrb[0].mxu0 %v950
      %v989 = vpop.f32.mrb[0].mxu0
      %v990 = vadd.f32 0.0, %v989
      %v991 = vpop.f32.mrb[0].mxu0
      %v992 = vpop.f32.mrb[0].mxu0
      %v993 = vpop.f32.mrb[0].mxu0
      %994 = vdwg.mxu0
      %v995 = vmul.f32 %v990, 0.25
      %v996 = vadd.f32 %v995, %v757
      %v997 = vsel %vm883, %v996, -inf
      %998 = vmax.xlane.f32.xlu0 %v997
      %v999 = vpop.xlane.xlu0 %998
      %v1000 = vsub.f32 %v996, %v999
      %v1001 = vmul.f32 %v1000, 1.442695
      %v1002 = vpow.pop %v1001
      %v1003 = vsel %vm883, %v1002, 0.0
      %1004 = vadd.xlane.f32.xlu0 %v1003
      %v1005 = vpop.xlane.xlu0 %1004
      %v1006 = vrcp.pop %v1005
      %v1007 = vmul.f32 %v1002, %v1006
      %v1008 = vpack.c.bf16 %v1007, %v1007
      %1009 = vrot.lane.b32.xlu0 %v830, 48
      %v1010 = vpop.permute.xlu0 %1009
      %v1012 = vsel %vm883, %v1008, 0
      %v1015 = vsel %vm901, %v1010, 0
      %1017 = vmatprep.subr.bf16.mxu0 0
      %1018 = vmatpush1.bf16.msra.mxu0 %v1015
      %1019 = vmatprep.subr.bf16.mxu0 0
      %1020 = vmatpush1.bf16.msra.mxu0 0
      %1021 = vmatprep.subr.bf16.mxu0 0
      %1022 = vmatpush1.bf16.msra.mxu0 0
      %1023 = vmatprep.subr.bf16.mxu0 0
      %1024 = vmatpush1.bf16.msra.mxu0 0
      %1025 = vmatprep.subr.bf16.mxu0 0
      %1026 = vmatpush1.bf16.msra.mxu0 0
      %1027 = vmatprep.subr.bf16.mxu0 0
      %1028 = vmatpush1.bf16.msra.mxu0 0
      %1029 = vmatprep.subr.bf16.mxu0 0
      %1030 = vmatpush1.bf16.msra.mxu0 0
      %1031 = vmatprep.subr.bf16.mxu0 0
      %1032 = vmatpush1.bf16.msra.mxu0 0
      %1033 = vmatprep.subr.bf16.mxu0 0
      %1034 = vmatpush1.bf16.msra.mxu0 0
      %1035 = vmatprep.subr.bf16.mxu0 0
      %1036 = vmatpush1.bf16.msra.mxu0 0
      %1037 = vmatprep.subr.bf16.mxu0 0
      %1038 = vmatpush1.bf16.msra.mxu0 0
      %1039 = vmatprep.subr.bf16.mxu0 0
      %1040 = vmatpush1.bf16.msra.mxu0 0
      %1041 = vmatprep.subr.bf16.mxu0 0
      %1042 = vmatpush1.bf16.msra.mxu0 0
      %1043 = vmatprep.subr.bf16.mxu0 0
      %1044 = vmatpush1.bf16.msra.mxu0 0
      %1045 = vmatprep.subr.bf16.mxu0 0
      %1046 = vmatpush1.bf16.msra.mxu0 0
      %1047 = vmatprep.subr.bf16.mxu0 0
      %1048 = vmatpush1.bf16.msra.mxu0 0
      %1049 = vmatprep.mubr.bf16.mxu0 0
      %1050 = vmatmul.mubr.bf16.gmra.mrb[0].mxu0 %v1012
      %v1051 = vpop.f32.mrb[0].mxu0
      %v1052 = vadd.f32 0.0, %v1051
      %v1053 = vpop.f32.mrb[0].mxu0
      %v1054 = vpop.f32.mrb[0].mxu0
      %v1055 = vpop.f32.mrb[0].mxu0
      %1056 = vdwg.mxu0
      %1058 = vrot.lane.b32.xlu0 %v1052, 16
      %v1059 = vpop.permute.xlu0 %1058
      %v1061 = vsel %vm834, %v940, %v1059
      %v1062 = vpack.c.bf16 %v1061, %v1061
      %v1063 = vld [vmem:[%s10] sm:$0x1]
      %v1065 = vlaneseq
      %v1066 = vshrl.u32 %v1065, 7
      %v1067 = vsub.s32 0, %v1066
      %v1068 = vrot.slane %v1063, %v1067
      %v1074 = vunpack.c.l.b16 %v762
      %v1075 = vunpack.c.l.b16 %v763
      %v1076 = vunpack.c.l.b16 %v764
      %v1077 = vunpack.c.l.b16 %v765
      %v1078 = vpack.c.b16 %v1075, %v1074
      %v1079 = vpack.c.b16 %v1077, %v1076
      %v1083 = vsel %vm786, %v1062, 0
      %1085 = vmatprep.subr.bf16.mxu0 0
      %1086 = vmatpush1.bf16.msra.mxu0 %v1078
      %1087 = vmatprep.subr.bf16.mxu0 0
      %1088 = vmatpush1.bf16.msra.mxu0 %v1079
      %1089 = vmatprep.subr.bf16.mxu0 0
      %1090 = vmatpush1.bf16.msra.mxu0 0
      %1091 = vmatprep.subr.bf16.mxu0 0
      %1092 = vmatpush1.bf16.msra.mxu0 0
      %1093 = vmatprep.subr.bf16.mxu0 0
      %1094 = vmatpush1.bf16.msra.mxu0 0
      %1095 = vmatprep.subr.bf16.mxu0 0
      %1096 = vmatpush1.bf16.msra.mxu0 0
      %1097 = vmatprep.subr.bf16.mxu0 0
      %1098 = vmatpush1.bf16.msra.mxu0 0
      %1099 = vmatprep.subr.bf16.mxu0 0
      %1100 = vmatpush1.bf16.msra.mxu0 0
      %1101 = vmatprep.subr.bf16.mxu0 0
      %1102 = vmatpush1.bf16.msra.mxu0 0
      %1103 = vmatprep.subr.bf16.mxu0 0
      %1104 = vmatpush1.bf16.msra.mxu0 0
      %1105 = vmatprep.subr.bf16.mxu0 0
      %1106 = vmatpush1.bf16.msra.mxu0 0
      %1107 = vmatprep.subr.bf16.mxu0 0
      %1108 = vmatpush1.bf16.msra.mxu0 0
      %1109 = vmatprep.subr.bf16.mxu0 0
      %1110 = vmatpush1.bf16.msra.mxu0 0
      %1111 = vmatprep.subr.bf16.mxu0 0
      %1112 = vmatpush1.bf16.msra.mxu0 0
      %1113 = vmatprep.subr.bf16.mxu0 0
      %1114 = vmatpush1.bf16.msra.mxu0 0
      %1115 = vmatprep.subr.bf16.mxu0 0
      %1116 = vmatpush1.bf16.msra.mxu0 0
      %1117 = vmatprep.mubr.bf16.mxu0 0
      %1118 = vmatmul.mubr.bf16.gmra.mrb[0].mxu0 %v1083
      %v1119 = vpop.f32.mrb[0].mxu0
      %v1120 = vadd.f32 %v1068, %v1119
      %v1121 = vpop.f32.mrb[0].mxu0
      %v1122 = vpop.f32.mrb[0].mxu0
      %v1123 = vpop.f32.mrb[0].mxu0
      %1124 = vdwg.mxu0
      %v1125 = vadd.f32 %v756, %v1120
      %v1126 = vld [vmem:[%s11] sm:$0x1]
      %v1127 = vld [vmem:[%s12] sm:$0x1]
      %v1128 = vsel %vm786, %v1125, 0.0
      %1129 = vadd.xlane.f32.xlu0 %v1128
      %v1130 = vpop.xlane.xlu0 %1129
      %v1131 = vrcp.pop 32.0
      %v1132 = vmul.f32 %v1130, %v1131
      %v1133 = vsub.f32 %v1125, %v1132
      %v1134 = vmul.f32 %v1133, %v1133
      %v1135 = vsel %vm786, %v1134, 0.0
      %1136 = vadd.xlane.f32.xlu0 %v1135
      %v1137 = vpop.xlane.xlu0 %1136
      %v1138 = vmul.f32 %v1137, %v1131
      %v1139 = vadd.f32 %v1138, 1e-05
      %v1140 = vrsqrt.pop %v1139
      %v1141 = vmul.f32 %v1133, %v1140
      %v1143 = vlaneseq
      %v1144 = vshrl.u32 %v1143, 7
      %v1145 = vsub.s32 0, %v1144
      %v1146 = vrot.slane %v1126, %v1145
      %v1148 = vmul.f32 %v1141, %v1146
      %v1150 = vlaneseq
      %v1151 = vshrl.u32 %v1150, 7
      %v1152 = vsub.s32 0, %v1151
      %v1153 = vrot.slane %v1127, %v1152
      %v1155 = vadd.f32 %v1148, %v1153
      %v1156 = vpack.c.bf16 %v1155, %v1155
      %v1157 = vld [vmem:[%s13] sm:$0xf]
      %v1158 = vld [vmem:[%s13 + $0x4] sm:$0xf]
      %v1159 = vld [vmem:[%s13 + $0x8] sm:$0xf]
      %v1160 = vld [vmem:[%s13 + $0xc] sm:$0xf]
      %v1161 = vld [vmem:[%s14] sm:$0x1]
      %v1163 = vlaneseq
      %v1164 = vshrl.u32 %v1163, 7
      %v1165 = vsub.s32 0, %v1164
      %v1166 = vrot.slane %v1161, %v1165
      %v1172 = vunpack.c.l.b16 %v1157
      %v1173 = vunpack.c.l.b16 %v1158
      %v1174 = vunpack.c.l.b16 %v1159
      %v1175 = vunpack.c.l.b16 %v1160
      %v1176 = vpack.c.b16 %v1173, %v1172
      %v1177 = vpack.c.b16 %v1175, %v1174
      %v1181 = vsel %vm786, %v1156, 0
      %1183 = vmatprep.subr.bf16.mxu0 0
      %1184 = vmatpush1.bf16.msra.mxu0 %v1176
      %1185 = vmatprep.subr.bf16.mxu0 0
      %1186 = vmatpush1.bf16.msra.mxu0 %v1177
      %1187 = vmatprep.subr.bf16.mxu0 0
      %1188 = vmatpush1.bf16.msra.mxu0 0
      %1189 = vmatprep.subr.bf16.mxu0 0
      %1190 = vmatpush1.bf16.msra.mxu0 0
      %1191 = vmatprep.subr.bf16.mxu0 0
      %1192 = vmatpush1.bf16.msra.mxu0 0
      %1193 = vmatprep.subr.bf16.mxu0 0
      %1194 = vmatpush1.bf16.msra.mxu0 0
      %1195 = vmatprep.subr.bf16.mxu0 0
      %1196 = vmatpush1.bf16.msra.mxu0 0
      %1197 = vmatprep.subr.bf16.mxu0 0
      %1198 = vmatpush1.bf16.msra.mxu0 0
      %1199 = vmatprep.subr.bf16.mxu0 0
      %1200 = vmatpush1.bf16.msra.mxu0 0
      %1201 = vmatprep.subr.bf16.mxu0 0
      %1202 = vmatpush1.bf16.msra.mxu0 0
      %1203 = vmatprep.subr.bf16.mxu0 0
      %1204 = vmatpush1.bf16.msra.mxu0 0
      %1205 = vmatprep.subr.bf16.mxu0 0
      %1206 = vmatpush1.bf16.msra.mxu0 0
      %1207 = vmatprep.subr.bf16.mxu0 0
      %1208 = vmatpush1.bf16.msra.mxu0 0
      %1209 = vmatprep.subr.bf16.mxu0 0
      %1210 = vmatpush1.bf16.msra.mxu0 0
      %1211 = vmatprep.subr.bf16.mxu0 0
      %1212 = vmatpush1.bf16.msra.mxu0 0
      %1213 = vmatprep.subr.bf16.mxu0 0
      %1214 = vmatpush1.bf16.msra.mxu0 0
      %1215 = vmatprep.mubr.bf16.mxu0 0
      %1216 = vmatmul.mubr.bf16.gmra.mrb[0].mxu0 %v1181
      %v1217 = vpop.f32.mrb[0].mxu0
      %v1218 = vadd.f32 %v1166, %v1217
      %v1219 = vpop.f32.mrb[0].mxu0
      %v1220 = vpop.f32.mrb[0].mxu0
      %v1221 = vpop.f32.mrb[0].mxu0
      %1222 = vdwg.mxu0
      %v1223 = vmax.f32 %v1218, 0.0
      %v1224 = vpack.c.bf16 %v1223, %v1223
      %v1225 = vld [vmem:[%s15] sm:$0xf]
      %v1226 = vld [vmem:[%s15 + $0x4] sm:$0xf]
      %v1227 = vld [vmem:[%s15 + $0x8] sm:$0xf]
      %v1228 = vld [vmem:[%s15 + $0xc] sm:$0xf]
      %v1229 = vld [vmem:[%s15 + $0x10] sm:$0xf]
      %v1230 = vld [vmem:[%s15 + $0x14] sm:$0xf]
      %v1231 = vld [vmem:[%s15 + $0x18] sm:$0xf]
      %v1232 = vld [vmem:[%s15 + $0x1c] sm:$0xf]
      %v1233 = vld [vmem:[%s16] sm:$0x1]
      %v1235 = vlaneseq
      %v1236 = vshrl.u32 %v1235, 7
      %v1237 = vsub.s32 0, %v1236
      %v1238 = vrot.slane %v1233, %v1237
      %v1248 = vunpack.c.l.b16 %v1225
      %v1249 = vunpack.c.l.b16 %v1226
      %v1250 = vunpack.c.l.b16 %v1227
      %v1251 = vunpack.c.l.b16 %v1228
      %v1252 = vunpack.c.l.b16 %v1229
      %v1253 = vunpack.c.l.b16 %v1230
      %v1254 = vunpack.c.l.b16 %v1231
      %v1255 = vunpack.c.l.b16 %v1232
      %v1256 = vpack.c.b16 %v1249, %v1248
      %v1257 = vpack.c.b16 %v1251, %v1250
      %v1258 = vpack.c.b16 %v1253, %v1252
      %v1259 = vpack.c.b16 %v1255, %v1254
      %vm1264 = vcmask 523264
      %v1266 = vsel %vm1264, %v1224, 0
      %1268 = vmatprep.subr.bf16.mxu0 0
      %1269 = vmatpush1.bf16.msra.mxu0 %v1256
      %1270 = vmatprep.subr.bf16.mxu0 0
      %1271 = vmatpush1.bf16.msra.mxu0 %v1257
      %1272 = vmatprep.subr.bf16.mxu0 0
      %1273 = vmatpush1.bf16.msra.mxu0 %v1258
      %1274 = vmatprep.subr.bf16.mxu0 0
      %1275 = vmatpush1.bf16.msra.mxu0 %v1259
      %1276 = vmatprep.subr.bf16.mxu0 0
      %1277 = vmatpush1.bf16.msra.mxu0 0
      %1278 = vmatprep.subr.bf16.mxu0 0
      %1279 = vmatpush1.bf16.msra.mxu0 0
      %1280 = vmatprep.subr.bf16.mxu0 0
      %1281 = vmatpush1.bf16.msra.mxu0 0
      %1282 = vmatprep.subr.bf16.mxu0 0
      %1283 = vmatpush1.bf16.msra.mxu0 0
      %1284 = vmatprep.subr.bf16.mxu0 0
      %1285 = vmatpush1.bf16.msra.mxu0 0
      %1286 = vmatprep.subr.bf16.mxu0 0
      %1287 = vmatpush1.bf16.msra.mxu0 0
      %1288 = vmatprep.subr.bf16.mxu0 0
      %1289 = vmatpush1.bf16.msra.mxu0 0
      %1290 = vmatprep.subr.bf16.mxu0 0
      %1291 = vmatpush1.bf16.msra.mxu0 0
      %1292 = vmatprep.subr.bf16.mxu0 0
      %1293 = vmatpush1.bf16.msra.mxu0 0
      %1294 = vmatprep.subr.bf16.mxu0 0
      %1295 = vmatpush1.bf16.msra.mxu0 0
      %1296 = vmatprep.subr.bf16.mxu0 0
      %1297 = vmatpush1.bf16.msra.mxu0 0
      %1298 = vmatprep.subr.bf16.mxu0 0
      %1299 = vmatpush1.bf16.msra.mxu0 0
      %1300 = vmatprep.mubr.bf16.mxu0 0
      %1301 = vmatmul.mubr.bf16.gmra.mrb[0].mxu0 %v1266
      %v1302 = vpop.f32.mrb[0].mxu0
      %v1303 = vadd.f32 %v1238, %v1302
      %v1304 = vpop.f32.mrb[0].mxu0
      %v1305 = vpop.f32.mrb[0].mxu0
      %v1306 = vpop.f32.mrb[0].mxu0
      %1307 = vdwg.mxu0
      %v1308 = vadd.f32 %v1155, %v1303
      %v1309 = vld [vmem:[%s17] sm:$0x1]
      %v1310 = vld [vmem:[%s18] sm:$0x1]
      %v1311 = vsel %vm786, %v1308, 0.0
      %1312 = vadd.xlane.f32.xlu0 %v1311
      %v1313 = vpop.xlane.xlu0 %1312
      %v1314 = vmul.f32 %v1313, %v1131
      %v1315 = vsub.f32 %v1308, %v1314
      %v1316 = vmul.f32 %v1315, %v1315
      %v1317 = vsel %vm786, %v1316, 0.0
      %1318 = vadd.xlane.f32.xlu0 %v1317
      %v1319 = vpop.xlane.xlu0 %1318
      %v1320 = vmul.f32 %v1319, %v1131
      %v1321 = vadd.f32 %v1320, 1e-05
      %v1322 = vrsqrt.pop %v1321
      %v1323 = vmul.f32 %v1315, %v1322
      %v1325 = vlaneseq
      %v1326 = vshrl.u32 %v1325, 7
      %v1327 = vsub.s32 0, %v1326
      %v1328 = vrot.slane %v1309, %v1327
      %v1330 = vmul.f32 %v1323, %v1328
      %v1332 = vlaneseq
      %v1333 = vshrl.u32 %v1332, 7
      %v1334 = vsub.s32 0, %v1333
      %v1335 = vrot.slane %v1310, %v1334
      %v1337 = vadd.f32 %v1330, %v1335
      %s1338 = scalar_lea.vmem %s7, 16
      %v1339 = vld [vmem:[%s1338] sm:$0xf]
      %v1340 = vld [vmem:[%s1338 + $0x4] sm:$0xf]
      %v1341 = vld [vmem:[%s1338 + $0x8] sm:$0xf]
      %v1342 = vld [vmem:[%s1338 + $0xc] sm:$0xf]
      %s1343 = scalar_lea.vmem %s9, 16
      %v1344 = vld [vmem:[%s1343] sm:$0xf]
      %v1345 = vld [vmem:[%s1343 + $0x4] sm:$0xf]
      %v1346 = vld [vmem:[%s1343 + $0x8] sm:$0xf]
      %v1347 = vld [vmem:[%s1343 + $0xc] sm:$0xf]
      %v1348 = vpack.c.bf16 %v1337, %v1337
      %s1349 = scalar_lea.vmem %s8, 1
      %v1350 = vld [vmem:[%s1349] sm:$0x1]
      %v1352 = vlaneseq
      %v1353 = vshrl.u32 %v1352, 7
      %v1354 = vsub.s32 0, %v1353
      %v1355 = vrot.slane %v1350, %v1354
      %v1361 = vunpack.c.l.b16 %v1339
      %v1362 = vunpack.c.l.b16 %v1340
      %v1363 = vunpack.c.l.b16 %v1341
      %v1364 = vunpack.c.l.b16 %v1342
      %v1365 = vpack.c.b16 %v1362, %v1361
      %v1366 = vpack.c.b16 %v1364, %v1363
      %v1370 = vsel %vm786, %v1348, 0
      %1372 = vmatprep.subr.bf16.mxu0 0
      %1373 = vmatpush1.bf16.msra.mxu0 %v1365
      %1374 = vmatprep.subr.bf16.mxu0 0
      %1375 = vmatpush1.bf16.msra.mxu0 %v1366
      %1376 = vmatprep.subr.bf16.mxu0 0
      %1377 = vmatpush1.bf16.msra.mxu0 0
      %1378 = vmatprep.subr.bf16.mxu0 0
      %1379 = vmatpush1.bf16.msra.mxu0 0
      %1380 = vmatprep.subr.bf16.mxu0 0
      %1381 = vmatpush1.bf16.msra.mxu0 0
      %1382 = vmatprep.subr.bf16.mxu0 0
      %1383 = vmatpush1.bf16.msra.mxu0 0
      %1384 = vmatprep.subr.bf16.mxu0 0
      %1385 = vmatpush1.bf16.msra.mxu0 0
      %1386 = vmatprep.subr.bf16.mxu0 0
      %1387 = vmatpush1.bf16.msra.mxu0 0
      %1388 = vmatprep.subr.bf16.mxu0 0
      %1389 = vmatpush1.bf16.msra.mxu0 0
      %1390 = vmatprep.subr.bf16.mxu0 0
      %1391 = vmatpush1.bf16.msra.mxu0 0
      %1392 = vmatprep.subr.bf16.mxu0 0
      %1393 = vmatpush1.bf16.msra.mxu0 0
      %1394 = vmatprep.subr.bf16.mxu0 0
      %1395 = vmatpush1.bf16.msra.mxu0 0
      %1396 = vmatprep.subr.bf16.mxu0 0
      %1397 = vmatpush1.bf16.msra.mxu0 0
      %1398 = vmatprep.subr.bf16.mxu0 0
      %1399 = vmatpush1.bf16.msra.mxu0 0
      %1400 = vmatprep.subr.bf16.mxu0 0
      %1401 = vmatpush1.bf16.msra.mxu0 0
      %1402 = vmatprep.subr.bf16.mxu0 0
      %1403 = vmatpush1.bf16.msra.mxu0 0
      %1404 = vmatprep.mubr.bf16.mxu0 0
      %1405 = vmatmul.mubr.bf16.gmra.mrb[0].mxu0 %v1370
      %v1406 = vpop.f32.mrb[0].mxu0
      %v1407 = vadd.f32 %v1355, %v1406
      %v1408 = vpop.f32.mrb[0].mxu0
      %v1409 = vpop.f32.mrb[0].mxu0
      %v1410 = vpop.f32.mrb[0].mxu0
      %1411 = vdwg.mxu0
      %v1412 = vpack.c.bf16 %v1407, %v1407
      %1414 = vrot.lane.b32.xlu0 %v1412, 96
      %v1415 = vpop.permute.xlu0 %1414
      %v1417 = vsel %vm834, %v1412, 0
      %v1420 = vsel %vm834, %v1415, 0
      %1422 = vmatprep.subr.bf16.mxu0 0
      %1423 = vmatpush1.bf16.xpose.msra.mxu0 %v1420
      %1424 = vmatprep.subr.bf16.mxu0 0
      %1425 = vmatpush1.bf16.xpose.msra.mxu0 0
      %1426 = vmatprep.subr.bf16.mxu0 0
      %1427 = vmatpush1.bf16.xpose.msra.mxu0 0
      %1428 = vmatprep.subr.bf16.mxu0 0
      %1429 = vmatpush1.bf16.xpose.msra.mxu0 0
      %1430 = vmatprep.subr.bf16.mxu0 0
      %1431 = vmatpush1.bf16.xpose.msra.mxu0 0
      %1432 = vmatprep.subr.bf16.mxu0 0
      %1433 = vmatpush1.bf16.xpose.msra.mxu0 0
      %1434 = vmatprep.subr.bf16.mxu0 0
      %1435 = vmatpush1.bf16.xpose.msra.mxu0 0
      %1436 = vmatprep.subr.bf16.mxu0 0
      %1437 = vmatpush1.bf16.xpose.msra.mxu0 0
      %1438 = vmatprep.subr.bf16.mxu0 0
      %1439 = vmatpush1.bf16.xpose.msra.mxu0 0
      %1440 = vmatprep.subr.bf16.mxu0 0
      %1441 = vmatpush1.bf16.xpose.msra.mxu0 0
      %1442 = vmatprep.subr.bf16.mxu0 0
      %1443 = vmatpush1.bf16.xpose.msra.mxu0 0
      %1444 = vmatprep.subr.bf16.mxu0 0
      %1445 = vmatpush1.bf16.xpose.msra.mxu0 0
      %1446 = vmatprep.subr.bf16.mxu0 0
      %1447 = vmatpush1.bf16.xpose.msra.mxu0 0
      %1448 = vmatprep.subr.bf16.mxu0 0
      %1449 = vmatpush1.bf16.xpose.msra.mxu0 0
      %1450 = vmatprep.subr.bf16.mxu0 0
      %1451 = vmatpush1.bf16.xpose.msra.mxu0 0
      %1452 = vmatprep.subr.bf16.mxu0 0
      %1453 = vmatpush1.bf16.xpose.msra.mxu0 0
      %1454 = vmatprep.mubr.bf16.mxu0 0
      %1455 = vmatmul.mubr.bf16.gmra.mrb[0].mxu0 %v1417
      %v1456 = vpop.f32.mrb[0].mxu0
      %v1457 = vadd.f32 0.0, %v1456
      %v1458 = vpop.f32.mrb[0].mxu0
      %v1459 = vpop.f32.mrb[0].mxu0
      %v1460 = vpop.f32.mrb[0].mxu0
      %1461 = vdwg.mxu0
      %v1462 = vmul.f32 %v1457, 0.25
      %v1463 = vadd.f32 %v1462, %v757
      %v1464 = vsel %vm883, %v1463, -inf
      %1465 = vmax.xlane.f32.xlu0 %v1464
      %v1466 = vpop.xlane.xlu0 %1465
      %v1467 = vsub.f32 %v1463, %v1466
      %v1468 = vmul.f32 %v1467, 1.442695
      %v1469 = vpow.pop %v1468
      %v1470 = vsel %vm883, %v1469, 0.0
      %1471 = vadd.xlane.f32.xlu0 %v1470
      %v1472 = vpop.xlane.xlu0 %1471
      %v1473 = vrcp.pop %v1472
      %v1474 = vmul.f32 %v1469, %v1473
      %v1475 = vpack.c.bf16 %v1474, %v1474
      %1476 = vrot.lane.b32.xlu0 %v1412, 64
      %v1477 = vpop.permute.xlu0 %1476
      %v1479 = vsel %vm883, %v1475, 0
      %v1482 = vsel %vm901, %v1477, 0
      %1484 = vmatprep.subr.bf16.mxu0 0
      %1485 = vmatpush1.bf16.msra.mxu0 %v1482
      %1486 = vmatprep.subr.bf16.mxu0 0
      %1487 = vmatpush1.bf16.msra.mxu0 0
      %1488 = vmatprep.subr.bf16.mxu0 0
      %1489 = vmatpush1.bf16.msra.mxu0 0
      %1490 = vmatprep.subr.bf16.mxu0 0
      %1491 = vmatpush1.bf16.msra.mxu0 0
      %1492 = vmatprep.subr.bf16.mxu0 0
      %1493 = vmatpush1.bf16.msra.mxu0 0
      %1494 = vmatprep.subr.bf16.mxu0 0
      %1495 = vmatpush1.bf16.msra.mxu0 0
      %1496 = vmatprep.subr.bf16.mxu0 0
      %1497 = vmatpush1.bf16.msra.mxu0 0
      %1498 = vmatprep.subr.bf16.mxu0 0
      %1499 = vmatpush1.bf16.msra.mxu0 0
      %1500 = vmatprep.subr.bf16.mxu0 0
      %1501 = vmatpush1.bf16.msra.mxu0 0
      %1502 = vmatprep.subr.bf16.mxu0 0
      %1503 = vmatpush1.bf16.msra.mxu0 0
      %1504 = vmatprep.subr.bf16.mxu0 0
      %1505 = vmatpush1.bf16.msra.mxu0 0
      %1506 = vmatprep.subr.bf16.mxu0 0
      %1507 = vmatpush1.bf16.msra.mxu0 0
      %1508 = vmatprep.subr.bf16.mxu0 0
      %1509 = vmatpush1.bf16.msra.mxu0 0
      %1510 = vmatprep.subr.bf16.mxu0 0
      %1511 = vmatpush1.bf16.msra.mxu0 0
      %1512 = vmatprep.subr.bf16.mxu0 0
      %1513 = vmatpush1.bf16.msra.mxu0 0
      %1514 = vmatprep.subr.bf16.mxu0 0
      %1515 = vmatpush1.bf16.msra.mxu0 0
      %1516 = vmatprep.mubr.bf16.mxu0 0
      %1517 = vmatmul.mubr.bf16.gmra.mrb[0].mxu0 %v1479
      %v1518 = vpop.f32.mrb[0].mxu0
      %v1519 = vadd.f32 0.0, %v1518
      %v1520 = vpop.f32.mrb[0].mxu0
      %v1521 = vpop.f32.mrb[0].mxu0
      %v1522 = vpop.f32.mrb[0].mxu0
      %1523 = vdwg.mxu0
      %1524 = vrot.lane.b32.xlu0 %v1412, 112
      %v1525 = vpop.permute.xlu0 %1524
      %1526 = vrot.lane.b32.xlu0 %v1412, 80
      %v1527 = vpop.permute.xlu0 %1526
      %v1529 = vsel %vm834, %v1525, 0
      %v1532 = vsel %vm834, %v1527, 0
      %1534 = vmatprep.subr.bf16.mxu0 0
      %1535 = vmatpush1.bf16.xpose.msra.mxu0 %v1532
      %1536 = vmatprep.subr.bf16.mxu0 0
      %1537 = vmatpush1.bf16.xpose.msra.mxu0 0
      %1538 = vmatprep.subr.bf16.mxu0 0
      %1539 = vmatpush1.bf16.xpose.msra.mxu0 0
      %1540 = vmatprep.subr.bf16.mxu0 0
      %1541 = vmatpush1.bf16.xpose.msra.mxu0 0
      %1542 = vmatprep.subr.bf16.mxu0 0
      %1543 = vmatpush1.bf16.xpose.msra.mxu0 0
      %1544 = vmatprep.subr.bf16.mxu0 0
      %1545 = vmatpush1.bf16.xpose.msra.mxu0 0
      %1546 = vmatprep.subr.bf16.mxu0 0
      %1547 = vmatpush1.bf16.xpose.msra.mxu0 0
      %1548 = vmatprep.subr.bf16.mxu0 0
      %1549 = vmatpush1.bf16.xpose.msra.mxu0 0
      %1550 = vmatprep.subr.bf16.mxu0 0
      %1551 = vmatpush1.bf16.xpose.msra.mxu0 0
      %1552 = vmatprep.subr.bf16.mxu0 0
      %1553 = vmatpush1.bf16.xpose.msra.mxu0 0
      %1554 = vmatprep.subr.bf16.mxu0 0
      %1555 = vmatpush1.bf16.xpose.msra.mxu0 0
      %1556 = vmatprep.subr.bf16.mxu0 0
      %1557 = vmatpush1.bf16.xpose.msra.mxu0 0
      %1558 = vmatprep.subr.bf16.mxu0 0
      %1559 = vmatpush1.bf16.xpose.msra.mxu0 0
      %1560 = vmatprep.subr.bf16.mxu0 0
      %1561 = vmatpush1.bf16.xpose.msra.mxu0 0
      %1562 = vmatprep.subr.bf16.mxu0 0
      %1563 = vmatpush1.bf16.xpose.msra.mxu0 0
      %1564 = vmatprep.subr.bf16.mxu0 0
      %1565 = vmatpush1.bf16.xpose.msra.mxu0 0
      %1566 = vmatprep.mubr.bf16.mxu0 0
      %1567 = vmatmul.mubr.bf16.gmra.mrb[0].mxu0 %v1529
      %v1568 = vpop.f32.mrb[0].mxu0
      %v1569 = vadd.f32 0.0, %v1568
      %v1570 = vpop.f32.mrb[0].mxu0
      %v1571 = vpop.f32.mrb[0].mxu0
      %v1572 = vpop.f32.mrb[0].mxu0
      %1573 = vdwg.mxu0
      %v1574 = vmul.f32 %v1569, 0.25
      %v1575 = vadd.f32 %v1574, %v757
      %v1576 = vsel %vm883, %v1575, -inf
      %1577 = vmax.xlane.f32.xlu0 %v1576
      %v1578 = vpop.xlane.xlu0 %1577
      %v1579 = vsub.f32 %v1575, %v1578
      %v1580 = vmul.f32 %v1579, 1.442695
      %v1581 = vpow.pop %v1580
      %v1582 = vsel %vm883, %v1581, 0.0
      %1583 = vadd.xlane.f32.xlu0 %v1582
      %v1584 = vpop.xlane.xlu0 %1583
      %v1585 = vrcp.pop %v1584
      %v1586 = vmul.f32 %v1581, %v1585
      %v1587 = vpack.c.bf16 %v1586, %v1586
      %1588 = vrot.lane.b32.xlu0 %v1412, 48
      %v1589 = vpop.permute.xlu0 %1588
      %v1591 = vsel %vm883, %v1587, 0
      %v1594 = vsel %vm901, %v1589, 0
      %1596 = vmatprep.subr.bf16.mxu0 0
      %1597 = vmatpush1.bf16.msra.mxu0 %v1594
      %1598 = vmatprep.subr.bf16.mxu0 0
      %1599 = vmatpush1.bf16.msra.mxu0 0
      %1600 = vmatprep.subr.bf16.mxu0 0
      %1601 = vmatpush1.bf16.msra.mxu0 0
      %1602 = vmatprep.subr.bf16.mxu0 0
      %1603 = vmatpush1.bf16.msra.mxu0 0
      %1604 = vmatprep.subr.bf16.mxu0 0
      %1605 = vmatpush1.bf16.msra.mxu0 0
      %1606 = vmatprep.subr.bf16.mxu0 0
      %1607 = vmatpush1.bf16.msra.mxu0 0
      %1608 = vmatprep.subr.bf16.mxu0 0
      %1609 = vmatpush1.bf16.msra.mxu0 0
      %1610 = vmatprep.subr.bf16.mxu0 0
      %1611 = vmatpush1.bf16.msra.mxu0 0
      %1612 = vmatprep.subr.bf16.mxu0 0
      %1613 = vmatpush1.bf16.msra.mxu0 0
      %1614 = vmatprep.subr.bf16.mxu0 0
      %1615 = vmatpush1.bf16.msra.mxu0 0
      %1616 = vmatprep.subr.bf16.mxu0 0
      %1617 = vmatpush1.bf16.msra.mxu0 0
      %1618 = vmatprep.subr.bf16.mxu0 0
      %1619 = vmatpush1.bf16.msra.mxu0 0
      %1620 = vmatprep.subr.bf16.mxu0 0
      %1621 = vmatpush1.bf16.msra.mxu0 0
      %1622 = vmatprep.subr.bf16.mxu0 0
      %1623 = vmatpush1.bf16.msra.mxu0 0
      %1624 = vmatprep.subr.bf16.mxu0 0
      %1625 = vmatpush1.bf16.msra.mxu0 0
      %1626 = vmatprep.subr.bf16.mxu0 0
      %1627 = vmatpush1.bf16.msra.mxu0 0
      %1628 = vmatprep.mubr.bf16.mxu0 0
      %1629 = vmatmul.mubr.bf16.gmra.mrb[0].mxu0 %v1591
      %v1630 = vpop.f32.mrb[0].mxu0
      %v1631 = vadd.f32 0.0, %v1630
      %v1632 = vpop.f32.mrb[0].mxu0
      %v1633 = vpop.f32.mrb[0].mxu0
      %v1634 = vpop.f32.mrb[0].mxu0
      %1635 = vdwg.mxu0
      %1637 = vrot.lane.b32.xlu0 %v1631, 16
      %v1638 = vpop.permute.xlu0 %1637
      %v1640 = vsel %vm834, %v1519, %v1638
      %v1641 = vpack.c.bf16 %v1640, %v1640
      %s1642 = scalar_lea.vmem %s10, 1
      %v1643 = vld [vmem:[%s1642] sm:$0x1]
      %v1645 = vlaneseq
      %v1646 = vshrl.u32 %v1645, 7
      %v1647 = vsub.s32 0, %v1646
      %v1648 = vrot.slane %v1643, %v1647
      %v1654 = vunpack.c.l.b16 %v1344
      %v1655 = vunpack.c.l.b16 %v1345
      %v1656 = vunpack.c.l.b16 %v1346
      %v1657 = vunpack.c.l.b16 %v1347
      %v1658 = vpack.c.b16 %v1655, %v1654
      %v1659 = vpack.c.b16 %v1657, %v1656
      %v1663 = vsel %vm786, %v1641, 0
      %1665 = vmatprep.subr.bf16.mxu0 0
      %1666 = vmatpush1.bf16.msra.mxu0 %v1658
      %1667 = vmatprep.subr.bf16.mxu0 0
      %1668 = vmatpush1.bf16.msra.mxu0 %v1659
      %1669 = vmatprep.subr.bf16.mxu0 0
      %1670 = vmatpush1.bf16.msra.mxu0 0
      %1671 = vmatprep.subr.bf16.mxu0 0
      %1672 = vmatpush1.bf16.msra.mxu0 0
      %1673 = vmatprep.subr.bf16.mxu0 0
      %1674 = vmatpush1.bf16.msra.mxu0 0
      %1675 = vmatprep.subr.bf16.mxu0 0
      %1676 = vmatpush1.bf16.msra.mxu0 0
      %1677 = vmatprep.subr.bf16.mxu0 0
      %1678 = vmatpush1.bf16.msra.mxu0 0
      %1679 = vmatprep.subr.bf16.mxu0 0
      %1680 = vmatpush1.bf16.msra.mxu0 0
      %1681 = vmatprep.subr.bf16.mxu0 0
      %1682 = vmatpush1.bf16.msra.mxu0 0
      %1683 = vmatprep.subr.bf16.mxu0 0
      %1684 = vmatpush1.bf16.msra.mxu0 0
      %1685 = vmatprep.subr.bf16.mxu0 0
      %1686 = vmatpush1.bf16.msra.mxu0 0
      %1687 = vmatprep.subr.bf16.mxu0 0
      %1688 = vmatpush1.bf16.msra.mxu0 0
      %1689 = vmatprep.subr.bf16.mxu0 0
      %1690 = vmatpush1.bf16.msra.mxu0 0
      %1691 = vmatprep.subr.bf16.mxu0 0
      %1692 = vmatpush1.bf16.msra.mxu0 0
      %1693 = vmatprep.subr.bf16.mxu0 0
      %1694 = vmatpush1.bf16.msra.mxu0 0
      %1695 = vmatprep.subr.bf16.mxu0 0
      %1696 = vmatpush1.bf16.msra.mxu0 0
      %1697 = vmatprep.mubr.bf16.mxu0 0
      %1698 = vmatmul.mubr.bf16.gmra.mrb[0].mxu0 %v1663
      %v1699 = vpop.f32.mrb[0].mxu0
      %v1700 = vadd.f32 %v1648, %v1699
      %v1701 = vpop.f32.mrb[0].mxu0
      %v1702 = vpop.f32.mrb[0].mxu0
      %v1703 = vpop.f32.mrb[0].mxu0
      %1704 = vdwg.mxu0
      %v1705 = vadd.f32 %v1337, %v1700
      %s1706 = scalar_lea.vmem %s11, 1
      %v1707 = vld [vmem:[%s1706] sm:$0x1]
      %s1708 = scalar_lea.vmem %s12, 1
      %v1709 = vld [vmem:[%s1708] sm:$0x1]
      %v1710 = vsel %vm786, %v1705, 0.0
      %1711 = vadd.xlane.f32.xlu0 %v1710
      %v1712 = vpop.xlane.xlu0 %1711
      %v1713 = vmul.f32 %v1712, %v1131
      %v1714 = vsub.f32 %v1705, %v1713
      %v1715 = vmul.f32 %v1714, %v1714
      %v1716 = vsel %vm786, %v1715, 0.0
      %1717 = vadd.xlane.f32.xlu0 %v1716
      %v1718 = vpop.xlane.xlu0 %1717
      %v1719 = vmul.f32 %v1718, %v1131
      %v1720 = vadd.f32 %v1719, 1e-05
      %v1721 = vrsqrt.pop %v1720
      %v1722 = vmul.f32 %v1714, %v1721
      %v1724 = vlaneseq
      %v1725 = vshrl.u32 %v1724, 7
      %v1726 = vsub.s32 0, %v1725
      %v1727 = vrot.slane %v1707, %v1726
      %v1729 = vmul.f32 %v1722, %v1727
      %v1731 = vlaneseq
      %v1732 = vshrl.u32 %v1731, 7
      %v1733 = vsub.s32 0, %v1732
      %v1734 = vrot.slane %v1709, %v1733
      %v1736 = vadd.f32 %v1729, %v1734
      %v1737 = vpack.c.bf16 %v1736, %v1736
      %s1738 = scalar_lea.vmem %s13, 16
      %v1739 = vld [vmem:[%s1738] sm:$0xf]
      %v1740 = vld [vmem:[%s1738 + $0x4] sm:$0xf]
      %v1741 = vld [vmem:[%s1738 + $0x8] sm:$0xf]
      %v1742 = vld [vmem:[%s1738 + $0xc] sm:$0xf]
      %s1743 = scalar_lea.vmem %s14, 1
      %v1744 = vld [vmem:[%s1743] sm:$0x1]
      %v1746 = vlaneseq
      %v1747 = vshrl.u32 %v1746, 7
      %v1748 = vsub.s32 0, %v1747
      %v1749 = vrot.slane %v1744, %v1748
      %v1755 = vunpack.c.l.b16 %v1739
      %v1756 = vunpack.c.l.b16 %v1740
      %v1757 = vunpack.c.l.b16 %v1741
      %v1758 = vunpack.c.l.b16 %v1742
      %v1759 = vpack.c.b16 %v1756, %v1755
      %v1760 = vpack.c.b16 %v1758, %v1757
      %v1764 = vsel %vm786, %v1737, 0
      %1766 = vmatprep.subr.bf16.mxu0 0
      %1767 = vmatpush1.bf16.msra.mxu0 %v1759
      %1768 = vmatprep.subr.bf16.mxu0 0
      %1769 = vmatpush1.bf16.msra.mxu0 %v1760
      %1770 = vmatprep.subr.bf16.mxu0 0
      %1771 = vmatpush1.bf16.msra.mxu0 0
      %1772 = vmatprep.subr.bf16.mxu0 0
      %1773 = vmatpush1.bf16.msra.mxu0 0
      %1774 = vmatprep.subr.bf16.mxu0 0
      %1775 = vmatpush1.bf16.msra.mxu0 0
      %1776 = vmatprep.subr.bf16.mxu0 0
      %1777 = vmatpush1.bf16.msra.mxu0 0
      %1778 = vmatprep.subr.bf16.mxu0 0
      %1779 = vmatpush1.bf16.msra.mxu0 0
      %1780 = vmatprep.subr.bf16.mxu0 0
      %1781 = vmatpush1.bf16.msra.mxu0 0
      %1782 = vmatprep.subr.bf16.mxu0 0
      %1783 = vmatpush1.bf16.msra.mxu0 0
      %1784 = vmatprep.subr.bf16.mxu0 0
      %1785 = vmatpush1.bf16.msra.mxu0 0
      %1786 = vmatprep.subr.bf16.mxu0 0
      %1787 = vmatpush1.bf16.msra.mxu0 0
      %1788 = vmatprep.subr.bf16.mxu0 0
      %1789 = vmatpush1.bf16.msra.mxu0 0
      %1790 = vmatprep.subr.bf16.mxu0 0
      %1791 = vmatpush1.bf16.msra.mxu0 0
      %1792 = vmatprep.subr.bf16.mxu0 0
      %1793 = vmatpush1.bf16.msra.mxu0 0
      %1794 = vmatprep.subr.bf16.mxu0 0
      %1795 = vmatpush1.bf16.msra.mxu0 0
      %1796 = vmatprep.subr.bf16.mxu0 0
      %1797 = vmatpush1.bf16.msra.mxu0 0
      %1798 = vmatprep.mubr.bf16.mxu0 0
      %1799 = vmatmul.mubr.bf16.gmra.mrb[0].mxu0 %v1764
      %v1800 = vpop.f32.mrb[0].mxu0
      %v1801 = vadd.f32 %v1749, %v1800
      %v1802 = vpop.f32.mrb[0].mxu0
      %v1803 = vpop.f32.mrb[0].mxu0
      %v1804 = vpop.f32.mrb[0].mxu0
      %1805 = vdwg.mxu0
      %v1806 = vmax.f32 %v1801, 0.0
      %v1807 = vpack.c.bf16 %v1806, %v1806
      %s1808 = scalar_lea.vmem %s15, 32
      %v1809 = vld [vmem:[%s1808] sm:$0xf]
      %v1810 = vld [vmem:[%s1808 + $0x4] sm:$0xf]
      %v1811 = vld [vmem:[%s1808 + $0x8] sm:$0xf]
      %v1812 = vld [vmem:[%s1808 + $0xc] sm:$0xf]
      %v1813 = vld [vmem:[%s1808 + $0x10] sm:$0xf]
      %v1814 = vld [vmem:[%s1808 + $0x14] sm:$0xf]
      %v1815 = vld [vmem:[%s1808 + $0x18] sm:$0xf]
      %v1816 = vld [vmem:[%s1808 + $0x1c] sm:$0xf]
      %s1817 = scalar_lea.vmem %s16, 1
      %v1818 = vld [vmem:[%s1817] sm:$0x1]
      %v1820 = vlaneseq
      %v1821 = vshrl.u32 %v1820, 7
      %v1822 = vsub.s32 0, %v1821
      %v1823 = vrot.slane %v1818, %v1822
      %v1833 = vunpack.c.l.b16 %v1809
      %v1834 = vunpack.c.l.b16 %v1810
      %v1835 = vunpack.c.l.b16 %v1811
      %v1836 = vunpack.c.l.b16 %v1812
      %v1837 = vunpack.c.l.b16 %v1813
      %v1838 = vunpack.c.l.b16 %v1814
      %v1839 = vunpack.c.l.b16 %v1815
      %v1840 = vunpack.c.l.b16 %v1816
      %v1841 = vpack.c.b16 %v1834, %v1833
      %v1842 = vpack.c.b16 %v1836, %v1835
      %v1843 = vpack.c.b16 %v1838, %v1837
      %v1844 = vpack.c.b16 %v1840, %v1839
      %v1850 = vsel %vm1264, %v1807, 0
      %1852 = vmatprep.subr.bf16.mxu0 0
      %1853 = vmatpush1.bf16.msra.mxu0 %v1841
      %1854 = vmatprep.subr.bf16.mxu0 0
      %1855 = vmatpush1.bf16.msra.mxu0 %v1842
      %1856 = vmatprep.subr.bf16.mxu0 0
      %1857 = vmatpush1.bf16.msra.mxu0 %v1843
      %1858 = vmatprep.subr.bf16.mxu0 0
      %1859 = vmatpush1.bf16.msra.mxu0 %v1844
      %1860 = vmatprep.subr.bf16.mxu0 0
      %1861 = vmatpush1.bf16.msra.mxu0 0
      %1862 = vmatprep.subr.bf16.mxu0 0
      %1863 = vmatpush1.bf16.msra.mxu0 0
      %1864 = vmatprep.subr.bf16.mxu0 0
      %1865 = vmatpush1.bf16.msra.mxu0 0
      %1866 = vmatprep.subr.bf16.mxu0 0
      %1867 = vmatpush1.bf16.msra.mxu0 0
      %1868 = vmatprep.subr.bf16.mxu0 0
      %1869 = vmatpush1.bf16.msra.mxu0 0
      %1870 = vmatprep.subr.bf16.mxu0 0
      %1871 = vmatpush1.bf16.msra.mxu0 0
      %1872 = vmatprep.subr.bf16.mxu0 0
      %1873 = vmatpush1.bf16.msra.mxu0 0
      %1874 = vmatprep.subr.bf16.mxu0 0
      %1875 = vmatpush1.bf16.msra.mxu0 0
      %1876 = vmatprep.subr.bf16.mxu0 0
      %1877 = vmatpush1.bf16.msra.mxu0 0
      %1878 = vmatprep.subr.bf16.mxu0 0
      %1879 = vmatpush1.bf16.msra.mxu0 0
      %1880 = vmatprep.subr.bf16.mxu0 0
      %1881 = vmatpush1.bf16.msra.mxu0 0
      %1882 = vmatprep.subr.bf16.mxu0 0
      %1883 = vmatpush1.bf16.msra.mxu0 0
      %1884 = vmatprep.mubr.bf16.mxu0 0
      %1885 = vmatmul.mubr.bf16.gmra.mrb[0].mxu0 %v1850
      %v1886 = vpop.f32.mrb[0].mxu0
      %v1887 = vadd.f32 %v1823, %v1886
      %v1888 = vpop.f32.mrb[0].mxu0
      %v1889 = vpop.f32.mrb[0].mxu0
      %v1890 = vpop.f32.mrb[0].mxu0
      %1891 = vdwg.mxu0
      %v1892 = vadd.f32 %v1736, %v1887
      %s1893 = scalar_lea.vmem %s17, 1
      %v1894 = vld [vmem:[%s1893] sm:$0x1]
      %s1895 = scalar_lea.vmem %s18, 1
      %v1896 = vld [vmem:[%s1895] sm:$0x1]
      %v1897 = vsel %vm786, %v1892, 0.0
      %1898 = vadd.xlane.f32.xlu0 %v1897
      %v1899 = vpop.xlane.xlu0 %1898
      %v1900 = vmul.f32 %v1899, %v1131
      %v1901 = vsub.f32 %v1892, %v1900
      %v1902 = vmul.f32 %v1901, %v1901
      %v1903 = vsel %vm786, %v1902, 0.0
      %1904 = vadd.xlane.f32.xlu0 %v1903
      %v1905 = vpop.xlane.xlu0 %1904
      %v1906 = vmul.f32 %v1905, %v1131
      %v1907 = vadd.f32 %v1906, 1e-05
      %v1908 = vrsqrt.pop %v1907
      %v1909 = vmul.f32 %v1901, %v1908
      %v1911 = vlaneseq
      %v1912 = vshrl.u32 %v1911, 7
      %v1913 = vsub.s32 0, %v1912
      %v1914 = vrot.slane %v1894, %v1913
      %v1916 = vmul.f32 %v1909, %v1914
      %v1918 = vlaneseq
      %v1919 = vshrl.u32 %v1918, 7
      %v1920 = vsub.s32 0, %v1919
      %v1921 = vrot.slane %v1896, %v1920
      %v1923 = vadd.f32 %v1916, %v1921
      %v1924 = vpack.c.bf16 %v1923, %v1923
      %v1925 = vld [vmem:[%s19] sm:$0xf]
      %v1926 = vld [vmem:[%s19 + $0x4] sm:$0xf]
      %v1927 = vld [vmem:[%s19 + $0x8] sm:$0xf]
      %v1928 = vld [vmem:[%s19 + $0xc] sm:$0xf]
      %v1929 = vld [vmem:[%s20] sm:$0x1]
      %v1931 = vlaneseq
      %v1932 = vshrl.u32 %v1931, 7
      %v1933 = vsub.s32 0, %v1932
      %v1934 = vrot.slane %v1929, %v1933
      %v1937 = vrot.slane %v1924, 2
      %v1942 = vunpack.c.l.b16 %v1925
      %v1943 = vunpack.c.l.b16 %v1926
      %v1944 = vunpack.c.l.b16 %v1927
      %v1945 = vunpack.c.l.b16 %v1928
      %v1946 = vpack.c.b16 %v1943, %v1942
      %v1947 = vpack.c.b16 %v1945, %v1944
      %v1951 = vsel %vm786, %v1937, 0
      %1953 = vmatprep.subr.bf16.mxu0 0
      %1954 = vmatpush1.bf16.msra.mxu0 %v1946
      %1955 = vmatprep.subr.bf16.mxu0 0
      %1956 = vmatpush1.bf16.msra.mxu0 %v1947
      %1957 = vmatprep.subr.bf16.mxu0 0
      %1958 = vmatpush1.bf16.msra.mxu0 0
      %1959 = vmatprep.subr.bf16.mxu0 0
      %1960 = vmatpush1.bf16.msra.mxu0 0
      %1961 = vmatprep.subr.bf16.mxu0 0
      %1962 = vmatpush1.bf16.msra.mxu0 0
      %1963 = vmatprep.subr.bf16.mxu0 0
      %1964 = vmatpush1.bf16.msra.mxu0 0
      %1965 = vmatprep.subr.bf16.mxu0 0
      %1966 = vmatpush1.bf16.msra.mxu0 0
      %1967 = vmatprep.subr.bf16.mxu0 0
      %1968 = vmatpush1.bf16.msra.mxu0 0
      %1969 = vmatprep.subr.bf16.mxu0 0
      %1970 = vmatpush1.bf16.msra.mxu0 0
      %1971 = vmatprep.subr.bf16.mxu0 0
      %1972 = vmatpush1.bf16.msra.mxu0 0
      %1973 = vmatprep.subr.bf16.mxu0 0
      %1974 = vmatpush1.bf16.msra.mxu0 0
      %1975 = vmatprep.subr.bf16.mxu0 0
      %1976 = vmatpush1.bf16.msra.mxu0 0
      %1977 = vmatprep.subr.bf16.mxu0 0
      %1978 = vmatpush1.bf16.msra.mxu0 0
      %1979 = vmatprep.subr.bf16.mxu0 0
      %1980 = vmatpush1.bf16.msra.mxu0 0
      %1981 = vmatprep.subr.bf16.mxu0 0
      %1982 = vmatpush1.bf16.msra.mxu0 0
      %1983 = vmatprep.subr.bf16.mxu0 0
      %1984 = vmatpush1.bf16.msra.mxu0 0
      %1985 = vmatprep.mubr.bf16.mxu0 0
      %1986 = vmatmul.mubr.bf16.gmra.mrb[0].mxu0 %v1951
      %v1987 = vpop.f32.mrb[0].mxu0
      %v1988 = vadd.f32 %v1934, %v1987
      %v1989 = vpop.f32.mrb[0].mxu0
      %v1990 = vpop.f32.mrb[0].mxu0
      %v1991 = vpop.f32.mrb[0].mxu0
      %1992 = vdwg.mxu0
      %vm1993 = vcmask 11264
      %1994 = vst.msk [vmem:[%s668] sm:$0xf] %vm1993, %v1988
      %p1995 = scmp.lt.s32.totalorder %s32, 1
      %s1996 = scalar_select %p1995, %s32, 1
      %s1997 = smul.addr %s1996, 4
      %s1998 = scalar_lea.vmem %s21, %s1997
      // Predicated region
      $region105: #{nap_forward.1} parent=103 // pred_check
        %p1999 = pneg %p501
      $region106: #{nap_forward.1} parent=103 // pred_check_branch
        %2001 = sbr.rel (%p1999) target = $region108
      $region107: #{nap_forward.1} parent=103 // pred_region
        _
      $region108: #{nap_forward.1} parent=103 // pred_fallthru
        _
    $region104: #{nap_forward.1} parent=5 // pred_fallthru
      _
    %p2002 = scmp.le.s32.totalorder 2, %s27
    // Predicated region
    $region109: #{nap_forward.1} parent=5 // pred_check
      %p2003 = pneg %p2002
    $region110: #{nap_forward.1} parent=5 // pred_check_branch
      %2005 = sbr.rel (%p2003) target = $region112
    $region111: #{nap_forward.1} parent=5 // pred_region
      %s2006 = ssub.s32 %s27, 2
      // Predicated region
      $region113: #{nap_forward.1} parent=111 // pred_check
        %p2007 = pneg %p507
      $region114: #{nap_forward.1} parent=111 // pred_check_branch
        %2009 = sbr.rel (%p2007) target = $region116
      $region115: #{nap_forward.1} parent=111 // pred_region
        %p2010 = scmp.lt.s32.totalorder %s33, 1
        %s2011 = scalar_select %p2010, %s33, 1
        %s2012 = smul.addr %s2011, 4
        %s2013 = scalar_lea.vmem %s21, %s2012
      $region116: #{nap_forward.1} parent=111 // pred_fallthru
        _
    $region112: #{nap_forward.1} parent=5 // pred_fallthru
      _
  $region6: #{nap_forward.1} parent=0 // loop_footer
    %s31 = sadd.s32 1, %s27
  $region7: #{nap_forward.1} parent=0 // loop_footer_branch
    %26 = sbr.rel target = $region3
  $region8: #{nap_forward.1} parent=0 // loop_exit
    _

</llo_original>
